<compile_context>
chip_gen: v6e
topology: v6e:2x2x1
jax: 0.10.0
libtpu: 0.0.40
codegen_flags: <defaults>
</compile_context>

<pallas_src>
import functools

import jax
import jax.numpy as jnp
import numpy as np
from jax import lax
from jax.experimental import pallas as pl
from jax.experimental.pallas import tpu as pltpu


# (dy, dx) read offsets of the 9 conv taps, tap index t = ky*3 + kx.
_TAPS = tuple((ky - 1, kx - 1) for ky in range(3) for kx in range(3))
_BIAS_ROWS = 16   # constant block appended to the stacked RHS (bias fold, bf16-group aligned)


def _is_pow2(n):
    return n > 0 and (n & (n - 1)) == 0


def _row_col_indices(NP, HW, W):
    """Per-lane (row, col) index of the pixel each lane holds; shape (1, NP) int32."""
    lane = lax.broadcasted_iota(jnp.int32, (1, NP), 1)
    if _is_pow2(HW) and _is_pow2(W):
        pix = jnp.bitwise_and(lane, HW - 1)
        jj = jnp.bitwise_and(pix, W - 1)
        ii = jnp.right_shift(pix, int(round(np.log2(W))))
    else:
        # general path (not hit in the demo); int div/mod by a constant.
        pix = lane % HW
        jj = pix % W
        ii = pix // W
    return ii, jj


def _tap_mask(dy, dx, ii, jj, H, W):
    """f32 (1, NP) validity mask for tap (dy, dx); None if the tap is always valid."""
    m = None

    def _and(a, b):
        return b if a is None else jnp.logical_and(a, b)

    if dy == -1:
        m = _and(m, ii >= 1)
    elif dy == 1:
        m = _and(m, ii <= H - 2)
    if dx == -1:
        m = _and(m, jj >= 1)
    elif dx == 1:
        m = _and(m, jj <= W - 2)
    return None if m is None else m.astype(jnp.float32)


def _shifted_tap(src, dy, dx, ii, jj, H, W):
    """result[..., p] = src[..., p + dy*W + dx]; zeros where the read leaves the image.

    The destination-based mask also kills batch-boundary bleed and lane wrap-around,
    because the taps only span +-1 row / col.
    """
    off = dy * W + dx
    NP = src.shape[-1]
    s = src if off == 0 else pltpu.roll(src, (-off) % NP, axis=1)   # XLU lane rotate
    m = _tap_mask(dy, dx, ii, jj, H, W)
    return s if m is None else s * m


# ----------------------------------------------------------------------------
# Kernel: one ConvGRU cell step for the whole batch.
#   z = sigmoid(conv3x3([x, h]))        (update gate)
#   r = sigmoid(conv3x3([x, h]))        (reset gate)
#   n = tanh   (conv3x3([x, r*h]))      (candidate)
#   h' = (1 - z) * h + z * n
# Data lives as (channels, batch*H*W): lanes hold pixels, sublanes channels.
# ----------------------------------------------------------------------------
def _convgru_cell_kernel(x_ref, h_ref, w1_ref, w2_ref, out_ref,
                         rhs1_ref, rhs2_ref, *, H, W):
    B, C, HW = x_ref.shape
    NP = B * HW
    C2 = 2 * C

    ii, jj = _row_col_indices(NP, HW, W)

    # Fold batch into the lane axis. HW is a multiple of 128, so these concats are
    # lane/sublane-aligned and should be pure vreg relabeling (no data movement).
    x_cat = jnp.concatenate([x_ref[b] for b in range(B)], axis=1)   # (C, NP)
    h_cat = jnp.concatenate([h_ref[b] for b in range(B)], axis=1)   # (C, NP)
    xh = jnp.concatenate([x_cat, h_cat], axis=0)                    # (2C, NP)

    # --- gates conv: stage the 9 shifted/masked taps as one stacked-K RHS (bf16).
    for t, (dy, dx) in enumerate(_TAPS):
        slab = _shifted_tap(xh, dy, dx, ii, jj, H, W)               # (2C, NP) f32
        rhs1_ref[t * C2:(t + 1) * C2, :] = slab.astype(jnp.bfloat16)
    # Bias fold: first row of this block is ones (matches the bias column of w1).
    ones_row = (lax.broadcasted_iota(jnp.int32, (_BIAS_ROWS, NP), 0) == 0)
    rhs1_ref[9 * C2:9 * C2 + _BIAS_ROWS, :] = (
        ones_row.astype(jnp.float32).astype(jnp.bfloat16))

    # Single bf16 MXU matmul for update / reset / candidate-x (+ bias):
    #   (3C, 18C+16) @ (18C+16, NP) -> (3C, NP) f32
    pre = jnp.dot(w1_ref[...], rhs1_ref[...], preferred_element_type=jnp.float32)

    z = jax.nn.sigmoid(pre[0:C])           # update gate   (f32 elementwise math)
    r = jax.nn.sigmoid(pre[C:2 * C])       # reset gate
    rh = r * h_cat                         # (C, NP) f32

    # --- candidate conv over (r*h): same stacked-K trick (f32 staging keeps all
    # scratch stores 8-row aligned; cast to bf16 only at the matmul operand).
    for t, (dy, dx) in enumerate(_TAPS):
        rhs2_ref[t * C:(t + 1) * C, :] = _shifted_tap(rh, dy, dx, ii, jj, H, W)

    n = jnp.tanh(pre[2 * C:3 * C] +
                 jnp.dot(w2_ref[...], rhs2_ref[...].astype(jnp.bfloat16),
                         preferred_element_type=jnp.float32))

    h_new = (1.0 - z) * h_cat + z * n      # (C, NP) f32
    for b in range(B):                     # lane-aligned dense stores
        out_ref[b] = h_new[:, b * HW:(b + 1) * HW]


@jax.jit
def convgru_cell(x_nchw, h_nchw, params):
    """One ConvGRU cell step. Inputs/outputs are NCHW float32."""
    B, C, H, W = x_nchw.shape
    HW = H * W
    NP = B * HW
    assert C % 8 == 0 and HW % 128 == 0, "layout assumes C%8==0 and H*W%128==0"

    x2 = x_nchw.reshape(B, C, HW).astype(jnp.float32)    # free reshapes, no transpose
    h2 = h_nchw.reshape(B, C, HW).astype(jnp.float32)
    w1, w2 = params["w1"], params["w2"]
    K1 = w1.shape[1]                                     # 18C + _BIAS_ROWS

    full3 = lambda i: (0, 0, 0)
    full2 = lambda i: (0, 0)
    out = pl.pallas_call(
        functools.partial(_convgru_cell_kernel, H=H, W=W),
        out_shape=jax.ShapeDtypeStruct((B, C, HW), jnp.float32),
        grid_spec=pltpu.PrefetchScalarGridSpec(
            num_scalar_prefetch=0,
            grid=(1,),   # whole batch in one step; on v7x a batch-parallel grid
                         # (grid=(B,), "parallel") would engage both TensorCores
                         # if the kernel were not launch-overhead dominated.
            in_specs=[
                pl.BlockSpec((B, C, HW), full3),
                pl.BlockSpec((B, C, HW), full3),
                pl.BlockSpec((3 * C, K1), full2),        # packed gate weights (bf16)
                pl.BlockSpec((C, 9 * C), full2),         # packed candidate-h weights
            ],
            out_specs=pl.BlockSpec((B, C, HW), full3),
            scratch_shapes=[
                pltpu.VMEM((K1, NP), jnp.bfloat16),      # stacked RHS, gates conv
                pltpu.VMEM((9 * C, NP), jnp.float32),    # stacked RHS, (r*h) conv
            ],
        ),
        input_output_aliases={1: 0},                     # reuse h_prev's buffer for h_new
        compiler_params=pltpu.CompilerParams(
            dimension_semantics=("arbitrary",)),
    )(x2, h2, w1, w2)

    return out.reshape(B, C, H, W)


# ----------------------------------------------------------------------------
# Deterministic parameter init (same shapes as nn.Conv2d(2C, C, 3, padding=1)
# for the update / reset / candidate gates, OIHW like PyTorch), then packed
# into the stacked-K, lane-dense layouts the kernel consumes.
# ----------------------------------------------------------------------------
def init_echo_params(key, action_dim):
    C = action_dim
    assert C % 8 == 0, "action_dim must be a multiple of 8 for the packed layout"
    keys = jax.random.split(key, 6)
    bound = 1.0 / np.sqrt(2 * C * 9)

    torch_params = {}
    for i, nm in enumerate(("z", "r", "n")):
        torch_params[f"w{nm}"] = jax.random.uniform(
            keys[2 * i], (C, 2 * C, 3, 3), jnp.float32, -bound, bound)   # OIHW
        torch_params[f"b{nm}"] = jax.random.uniform(
            keys[2 * i + 1], (C,), jnp.float32, -bound, bound)

    def pack_taps(w):   # (O, I, 3, 3) -> (O, 9*I); column index = t*I + i, t = ky*3+kx
        O, I = w.shape[0], w.shape[1]
        return jnp.transpose(w, (0, 2, 3, 1)).reshape(O, 9 * I)

    wz, wr, wn = (torch_params[k] for k in ("wz", "wr", "wn"))
    wn_x_only = wn.at[:, C:].set(0.0)     # candidate h-part handled by the 2nd conv
    w1_core = jnp.concatenate(
        [pack_taps(wz), pack_taps(wr), pack_taps(wn_x_only)], axis=0)    # (3C, 18C)
    bias_col = jnp.concatenate(
        [torch_params["bz"], torch_params["br"], torch_params["bn"]]).reshape(3 * C, 1)
    w1 = jnp.concatenate(
        [w1_core, bias_col, jnp.zeros((3 * C, _BIAS_ROWS - 1), jnp.float32)], axis=1)
    w2 = pack_taps(wn[:, C:])                                            # (C, 9C)

    kernel_params = {
        "w1": w1.astype(jnp.bfloat16),    # (3C, 18C+16) lane-dense, bias folded in
        "w2": w2.astype(jnp.bfloat16),    # (C, 9C)
    }
    return kernel_params, torch_params


class Echo:
    """JAX/Pallas port of Echo: per-step ConvGRU with a hidden-state memory."""

    def __init__(self, action_dim=8, max_episode_step=10, key=None):
        if key is None:
            key = jax.random.PRNGKey(42)
        self.memory_size = max_episode_step
        self.params, self.torch_params = init_echo_params(key, action_dim)
        # TODO(synk): the per-step hidden-state memory is host-side Python state
        # (list of arrays), mirroring the PyTorch module; fusing multiple RL
        # steps into one pallas_call (h carried in VMEM) would amortize dispatch
        # and weight DMA but changes the module's per-call interface.
        self.frame_hidden_state = [None] * max_episode_step

    def __call__(self, x, step):
        # x: (B, C, H, W) NCHW, as in the PyTorch module. x.unsqueeze(0) gives a
        # length-1 sequence, so the ConvGRU reduces to a single cell step and
        # out[-1] is exactly the new hidden state.
        h_prev = self.frame_hidden_state[step]
        if h_prev is None:                 # ConvGRU inits hidden to zeros
            h_prev = jnp.zeros_like(x)
        h_new = convgru_cell(x, h_prev, self.params)
        self.frame_hidden_state[step] = lax.stop_gradient(h_new)  # .detach()
        return h_new

    def init_hidden_state(self):
        self.frame_hidden_state = [None] * self.memory_size


# ----------------------------------------------------------------------------
# Plain-JAX reference (NCHW, same math, all f32) used only for correctness check.
# ----------------------------------------------------------------------------
def _ref_cell(x, h, p):
    def conv(inp, w, b):
        y = lax.conv_general_dilated(inp, w, (1, 1), "SAME",
                                     dimension_numbers=("NCHW", "OIHW", "NCHW"))
        return y + b[None, :, None, None]

    comb = jnp.concatenate([x, h], axis=1)
    z = jax.nn.sigmoid(conv(comb, p["wz"], p["bz"]))
    r = jax.nn.sigmoid(conv(comb, p["wr"], p["br"]))
    comb2 = jnp.concatenate([x, r * h], axis=1)
    n = jnp.tanh(conv(comb2, p["wn"], p["bn"]))
    return (1.0 - z) * h + z * n


if __name__ == "__main__":
    key = jax.random.PRNGKey(0)
    kx1, kx2, kparam = jax.random.split(key, 3)

    B, C, H, W = 2, 8, 16, 16          # small action_dim=8 feature maps
    echo = Echo(action_dim=C, max_episode_step=10, key=kparam)

    x1 = jax.random.normal(kx1, (B, C, H, W), jnp.float32)
    x2 = jax.random.normal(kx2, (B, C, H, W), jnp.float32)

    out1 = echo(x1, step=0)            # hidden is None -> zeros
    out2 = echo(x2, step=0)            # reuses stored hidden from the 1st call
    jax.block_until_ready(out2)

    ref1 = _ref_cell(x1, jnp.zeros_like(x1), echo.torch_params)
    ref2 = _ref_cell(x2, ref1, echo.torch_params)
    # bf16 MXU operands (with f32 accumulation) bound the error to ~1e-2 over two
    # chained steps; an all-f32 operand variant of this kernel matches to ~1e-5.
    np.testing.assert_allclose(np.asarray(out1), np.asarray(ref1),
                               atol=3e-2, rtol=3e-2)
    np.testing.assert_allclose(np.asarray(out2), np.asarray(ref2),
                               atol=3e-2, rtol=3e-2)

    print("KERNEL_OK")
</pallas_src>

<mosaic_0001>
module attributes {stable_mosaic.version = 11 : i64} {
  func.func @_convgru_cell_kernel(%arg0: i32, %arg1: memref<2x8x256xf32, #tpu.memory_space<vmem>>, %arg2: memref<2x8x256xf32, #tpu.memory_space<vmem>>, %arg3: memref<24x160xbf16, #tpu.memory_space<vmem>>, %arg4: memref<8x72xbf16, #tpu.memory_space<vmem>>, %arg5: memref<2x8x256xf32, #tpu.memory_space<vmem>>, %arg6: memref<160x512xbf16, #tpu.memory_space<vmem>>, %arg7: memref<72x512xf32, #tpu.memory_space<vmem>>) attributes {dimension_semantics = [#tpu.dimension_semantics<arbitrary>], iteration_bounds = array<i64: 1>, scalar_prefetch = 0 : i64, scratch_operands = 2 : i64, tpu.core_type = #tpu.core_type<tc>, window_params = [{pipeline_mode = #tpu.pipeline_mode<synchronous>, transform_indices = @transform_0, window_bounds = array<i64: 2, 8, 256>}, {pipeline_mode = #tpu.pipeline_mode<synchronous>, transform_indices = @transform_1, window_bounds = array<i64: 2, 8, 256>}, {pipeline_mode = #tpu.pipeline_mode<synchronous>, transform_indices = @transform_2, window_bounds = array<i64: 24, 160>}, {pipeline_mode = #tpu.pipeline_mode<synchronous>, transform_indices = @transform_3, window_bounds = array<i64: 8, 72>}, {pipeline_mode = #tpu.pipeline_mode<synchronous>, transform_indices = @transform_4, window_bounds = array<i64: 2, 8, 256>}]} {
    %0 = tpu.iota {dimensions = array<i32: 1>} : vector<1x512xi32>
    %c255_i32 = arith.constant 255 : i32
    %1 = vector.broadcast %c255_i32 : i32 to vector<1x512xi32>
    %2 = arith.andi %0, %1 : vector<1x512xi32>
    %c15_i32 = arith.constant 15 : i32
    %3 = vector.broadcast %c15_i32 : i32 to vector<1x512xi32>
    %4 = arith.andi %2, %3 : vector<1x512xi32>
    %c4_i32 = arith.constant 4 : i32
    %5 = vector.broadcast %c4_i32 : i32 to vector<1x512xi32>
    %6 = arith.shrsi %2, %5 : vector<1x512xi32>
    %c0 = arith.constant 0 : index
    %c0_0 = arith.constant 0 : index
    %c0_1 = arith.constant 0 : index
    %7 = vector.load %arg1[%c0, %c0_0, %c0_1] : memref<2x8x256xf32, #tpu.memory_space<vmem>>, vector<1x8x256xf32>
    %8 = vector.shape_cast %7 : vector<1x8x256xf32> to vector<8x256xf32>
    %c1 = arith.constant 1 : index
    %c0_2 = arith.constant 0 : index
    %c0_3 = arith.constant 0 : index
    %9 = vector.load %arg1[%c1, %c0_2, %c0_3] : memref<2x8x256xf32, #tpu.memory_space<vmem>>, vector<1x8x256xf32>
    %10 = vector.shape_cast %9 : vector<1x8x256xf32> to vector<8x256xf32>
    %11 = tpu.concatenate %8, %10 in 1 : vector<8x256xf32>, vector<8x256xf32> -> vector<8x512xf32>
    %c0_4 = arith.constant 0 : index
    %c0_5 = arith.constant 0 : index
    %c0_6 = arith.constant 0 : index
    %12 = vector.load %arg2[%c0_4, %c0_5, %c0_6] : memref<2x8x256xf32, #tpu.memory_space<vmem>>, vector<1x8x256xf32>
    %13 = vector.shape_cast %12 : vector<1x8x256xf32> to vector<8x256xf32>
    %c1_7 = arith.constant 1 : index
    %c0_8 = arith.constant 0 : index
    %c0_9 = arith.constant 0 : index
    %14 = vector.load %arg2[%c1_7, %c0_8, %c0_9] : memref<2x8x256xf32, #tpu.memory_space<vmem>>, vector<1x8x256xf32>
    %15 = vector.shape_cast %14 : vector<1x8x256xf32> to vector<8x256xf32>
    %16 = tpu.concatenate %13, %15 in 1 : vector<8x256xf32>, vector<8x256xf32> -> vector<8x512xf32>
    %17 = tpu.concatenate %11, %16 in 0 : vector<8x512xf32>, vector<8x512xf32> -> vector<16x512xf32>
    %c17_i32 = arith.constant 17 : i32
    %18 = tpu.dynamic_rotate %17 by %c17_i32 dim 1 : vector<16x512xf32>, i32 -> vector<16x512xf32>
    %c1_i32 = arith.constant 1 : i32
    %19 = vector.broadcast %c1_i32 : i32 to vector<1x512xi32>
    %20 = arith.cmpi sge, %6, %19 : vector<1x512xi32>
    %c1_i32_10 = arith.constant 1 : i32
    %21 = vector.broadcast %c1_i32_10 : i32 to vector<1x512xi32>
    %22 = arith.cmpi sge, %4, %21 : vector<1x512xi32>
    %23 = arith.andi %20, %22 : vector<1x512xi1>
    %24 = arith.extui %23 : vector<1x512xi1> to vector<1x512xi32>
    %25 = arith.sitofp %24 : vector<1x512xi32> to vector<1x512xf32>
    %26 = vector.broadcast %25 : vector<1x512xf32> to vector<16x512xf32>
    %27 = arith.mulf %18, %26 : vector<16x512xf32>
    %28 = arith.truncf %27 : vector<16x512xf32> to vector<16x512xbf16>
    %c0_11 = arith.constant 0 : index
    %c0_12 = arith.constant 0 : index
    %29 = vector.load %arg6[%c0_11, %c0_12] : memref<160x512xbf16, #tpu.memory_space<vmem>>, vector<16x512xbf16>
    tpu.vector_store %arg6[%c0_11, %c0_12], %28 {strides = array<i32>} : memref<160x512xbf16, #tpu.memory_space<vmem>>, vector<16x512xbf16>,
    %c16_i32 = arith.constant 16 : i32
    %30 = tpu.dynamic_rotate %17 by %c16_i32 dim 1 : vector<16x512xf32>, i32 -> vector<16x512xf32>
    %c1_i32_13 = arith.constant 1 : i32
    %31 = vector.broadcast %c1_i32_13 : i32 to vector<1x512xi32>
    %32 = arith.cmpi sge, %6, %31 : vector<1x512xi32>
    %33 = arith.extui %32 : vector<1x512xi1> to vector<1x512xi32>
    %34 = arith.sitofp %33 : vector<1x512xi32> to vector<1x512xf32>
    %35 = vector.broadcast %34 : vector<1x512xf32> to vector<16x512xf32>
    %36 = arith.mulf %30, %35 : vector<16x512xf32>
    %37 = arith.truncf %36 : vector<16x512xf32> to vector<16x512xbf16>
    %c16 = arith.constant 16 : index
    %c0_14 = arith.constant 0 : index
    %38 = vector.load %arg6[%c16, %c0_14] : memref<160x512xbf16, #tpu.memory_space<vmem>>, vector<16x512xbf16>
    tpu.vector_store %arg6[%c16, %c0_14], %37 {strides = array<i32>} : memref<160x512xbf16, #tpu.memory_space<vmem>>, vector<16x512xbf16>,
    %c15_i32_15 = arith.constant 15 : i32
    %39 = tpu.dynamic_rotate %17 by %c15_i32_15 dim 1 : vector<16x512xf32>, i32 -> vector<16x512xf32>
    %c1_i32_16 = arith.constant 1 : i32
    %40 = vector.broadcast %c1_i32_16 : i32 to vector<1x512xi32>
    %41 = arith.cmpi sge, %6, %40 : vector<1x512xi32>
    %c14_i32 = arith.constant 14 : i32
    %42 = vector.broadcast %c14_i32 : i32 to vector<1x512xi32>
    %43 = arith.cmpi sle, %4, %42 : vector<1x512xi32>
    %44 = arith.andi %41, %43 : vector<1x512xi1>
    %45 = arith.extui %44 : vector<1x512xi1> to vector<1x512xi32>
    %46 = arith.sitofp %45 : vector<1x512xi32> to vector<1x512xf32>
    %47 = vector.broadcast %46 : vector<1x512xf32> to vector<16x512xf32>
    %48 = arith.mulf %39, %47 : vector<16x512xf32>
    %49 = arith.truncf %48 : vector<16x512xf32> to vector<16x512xbf16>
    %c32 = arith.constant 32 : index
    %c0_17 = arith.constant 0 : index
    %50 = vector.load %arg6[%c32, %c0_17] : memref<160x512xbf16, #tpu.memory_space<vmem>>, vector<16x512xbf16>
    tpu.vector_store %arg6[%c32, %c0_17], %49 {strides = array<i32>} : memref<160x512xbf16, #tpu.memory_space<vmem>>, vector<16x512xbf16>,
    %c1_i32_18 = arith.constant 1 : i32
    %51 = tpu.dynamic_rotate %17 by %c1_i32_18 dim 1 : vector<16x512xf32>, i32 -> vector<16x512xf32>
    %c1_i32_19 = arith.constant 1 : i32
    %52 = vector.broadcast %c1_i32_19 : i32 to vector<1x512xi32>
    %53 = arith.cmpi sge, %4, %52 : vector<1x512xi32>
    %54 = arith.extui %53 : vector<1x512xi1> to vector<1x512xi32>
    %55 = arith.sitofp %54 : vector<1x512xi32> to vector<1x512xf32>
    %56 = vector.broadcast %55 : vector<1x512xf32> to vector<16x512xf32>
    %57 = arith.mulf %51, %56 : vector<16x512xf32>
    %58 = arith.truncf %57 : vector<16x512xf32> to vector<16x512xbf16>
    %c48 = arith.constant 48 : index
    %c0_20 = arith.constant 0 : index
    %59 = vector.load %arg6[%c48, %c0_20] : memref<160x512xbf16, #tpu.memory_space<vmem>>, vector<16x512xbf16>
    tpu.vector_store %arg6[%c48, %c0_20], %58 {strides = array<i32>} : memref<160x512xbf16, #tpu.memory_space<vmem>>, vector<16x512xbf16>,
    %60 = arith.truncf %17 : vector<16x512xf32> to vector<16x512xbf16>
    %c64 = arith.constant 64 : index
    %c0_21 = arith.constant 0 : index
    %61 = vector.load %arg6[%c64, %c0_21] : memref<160x512xbf16, #tpu.memory_space<vmem>>, vector<16x512xbf16>
    tpu.vector_store %arg6[%c64, %c0_21], %60 {strides = array<i32>} : memref<160x512xbf16, #tpu.memory_space<vmem>>, vector<16x512xbf16>,
    %c511_i32 = arith.constant 511 : i32
    %62 = tpu.dynamic_rotate %17 by %c511_i32 dim 1 : vector<16x512xf32>, i32 -> vector<16x512xf32>
    %c14_i32_22 = arith.constant 14 : i32
    %63 = vector.broadcast %c14_i32_22 : i32 to vector<1x512xi32>
    %64 = arith.cmpi sle, %4, %63 : vector<1x512xi32>
    %65 = arith.extui %64 : vector<1x512xi1> to vector<1x512xi32>
    %66 = arith.sitofp %65 : vector<1x512xi32> to vector<1x512xf32>
    %67 = vector.broadcast %66 : vector<1x512xf32> to vector<16x512xf32>
    %68 = arith.mulf %62, %67 : vector<16x512xf32>
    %69 = arith.truncf %68 : vector<16x512xf32> to vector<16x512xbf16>
    %c80 = arith.constant 80 : index
    %c0_23 = arith.constant 0 : index
    %70 = vector.load %arg6[%c80, %c0_23] : memref<160x512xbf16, #tpu.memory_space<vmem>>, vector<16x512xbf16>
    tpu.vector_store %arg6[%c80, %c0_23], %69 {strides = array<i32>} : memref<160x512xbf16, #tpu.memory_space<vmem>>, vector<16x512xbf16>,
    %c497_i32 = arith.constant 497 : i32
    %71 = tpu.dynamic_rotate %17 by %c497_i32 dim 1 : vector<16x512xf32>, i32 -> vector<16x512xf32>
    %c14_i32_24 = arith.constant 14 : i32
    %72 = vector.broadcast %c14_i32_24 : i32 to vector<1x512xi32>
    %73 = arith.cmpi sle, %6, %72 : vector<1x512xi32>
    %c1_i32_25 = arith.constant 1 : i32
    %74 = vector.broadcast %c1_i32_25 : i32 to vector<1x512xi32>
    %75 = arith.cmpi sge, %4, %74 : vector<1x512xi32>
    %76 = arith.andi %73, %75 : vector<1x512xi1>
    %77 = arith.extui %76 : vector<1x512xi1> to vector<1x512xi32>
    %78 = arith.sitofp %77 : vector<1x512xi32> to vector<1x512xf32>
    %79 = vector.broadcast %78 : vector<1x512xf32> to vector<16x512xf32>
    %80 = arith.mulf %71, %79 : vector<16x512xf32>
    %81 = arith.truncf %80 : vector<16x512xf32> to vector<16x512xbf16>
    %c96 = arith.constant 96 : index
    %c0_26 = arith.constant 0 : index
    %82 = vector.load %arg6[%c96, %c0_26] : memref<160x512xbf16, #tpu.memory_space<vmem>>, vector<16x512xbf16>
    tpu.vector_store %arg6[%c96, %c0_26], %81 {strides = array<i32>} : memref<160x512xbf16, #tpu.memory_space<vmem>>, vector<16x512xbf16>,
    %c496_i32 = arith.constant 496 : i32
    %83 = tpu.dynamic_rotate %17 by %c496_i32 dim 1 : vector<16x512xf32>, i32 -> vector<16x512xf32>
    %c14_i32_27 = arith.constant 14 : i32
    %84 = vector.broadcast %c14_i32_27 : i32 to vector<1x512xi32>
    %85 = arith.cmpi sle, %6, %84 : vector<1x512xi32>
    %86 = arith.extui %85 : vector<1x512xi1> to vector<1x512xi32>
    %87 = arith.sitofp %86 : vector<1x512xi32> to vector<1x512xf32>
    %88 = vector.broadcast %87 : vector<1x512xf32> to vector<16x512xf32>
    %89 = arith.mulf %83, %88 : vector<16x512xf32>
    %90 = arith.truncf %89 : vector<16x512xf32> to vector<16x512xbf16>
    %c112 = arith.constant 112 : index
    %c0_28 = arith.constant 0 : index
    %91 = vector.load %arg6[%c112, %c0_28] : memref<160x512xbf16, #tpu.memory_space<vmem>>, vector<16x512xbf16>
    tpu.vector_store %arg6[%c112, %c0_28], %90 {strides = array<i32>} : memref<160x512xbf16, #tpu.memory_space<vmem>>, vector<16x512xbf16>,
    %c495_i32 = arith.constant 495 : i32
    %92 = tpu.dynamic_rotate %17 by %c495_i32 dim 1 : vector<16x512xf32>, i32 -> vector<16x512xf32>
    %c14_i32_29 = arith.constant 14 : i32
    %93 = vector.broadcast %c14_i32_29 : i32 to vector<1x512xi32>
    %94 = arith.cmpi sle, %6, %93 : vector<1x512xi32>
    %c14_i32_30 = arith.constant 14 : i32
    %95 = vector.broadcast %c14_i32_30 : i32 to vector<1x512xi32>
    %96 = arith.cmpi sle, %4, %95 : vector<1x512xi32>
    %97 = arith.andi %94, %96 : vector<1x512xi1>
    %98 = arith.extui %97 : vector<1x512xi1> to vector<1x512xi32>
    %99 = arith.sitofp %98 : vector<1x512xi32> to vector<1x512xf32>
    %100 = vector.broadcast %99 : vector<1x512xf32> to vector<16x512xf32>
    %101 = arith.mulf %92, %100 : vector<16x512xf32>
    %102 = arith.truncf %101 : vector<16x512xf32> to vector<16x512xbf16>
    %c128 = arith.constant 128 : index
    %c0_31 = arith.constant 0 : index
    %103 = vector.load %arg6[%c128, %c0_31] : memref<160x512xbf16, #tpu.memory_space<vmem>>, vector<16x512xbf16>
    tpu.vector_store %arg6[%c128, %c0_31], %102 {strides = array<i32>} : memref<160x512xbf16, #tpu.memory_space<vmem>>, vector<16x512xbf16>,
    %104 = tpu.iota {dimensions = array<i32: 0>} : vector<16x512xi32>
    %c0_i32 = arith.constant 0 : i32
    %105 = vector.broadcast %c0_i32 : i32 to vector<16x512xi32>
    %106 = arith.cmpi eq, %104, %105 : vector<16x512xi32>
    %107 = arith.extui %106 : vector<16x512xi1> to vector<16x512xi32>
    %108 = arith.sitofp %107 : vector<16x512xi32> to vector<16x512xf32>
    %109 = arith.truncf %108 : vector<16x512xf32> to vector<16x512xbf16>
    %c144 = arith.constant 144 : index
    %c0_32 = arith.constant 0 : index
    %110 = vector.load %arg6[%c144, %c0_32] : memref<160x512xbf16, #tpu.memory_space<vmem>>, vector<16x512xbf16>
    tpu.vector_store %arg6[%c144, %c0_32], %109 {strides = array<i32>} : memref<160x512xbf16, #tpu.memory_space<vmem>>, vector<16x512xbf16>,
    %c0_33 = arith.constant 0 : index
    %c0_34 = arith.constant 0 : index
    %111 = vector.load %arg3[%c0_33, %c0_34] : memref<24x160xbf16, #tpu.memory_space<vmem>>, vector<24x160xbf16>
    %c0_35 = arith.constant 0 : index
    %c0_36 = arith.constant 0 : index
    %112 = vector.load %arg6[%c0_35, %c0_36] : memref<160x512xbf16, #tpu.memory_space<vmem>>, vector<160x512xbf16>
    %cst = arith.constant dense<0.000000e+00> : vector<24x512xf32>
    %113 = tpu.matmul %111, %112, %cst {dimension_numbers = #tpu.dot_dimension_numbers<[1], [0], [0], [1], [0, 0, 1, 1], [], []>} : vector<24x160xbf16>, vector<160x512xbf16>, vector<24x512xf32> -> vector<24x512xf32>
    %114 = vector.extract_strided_slice %113 {offsets = [0, 0], sizes = [8, 512], strides = [1, 1]} : vector<24x512xf32> to vector<8x512xf32>
    %115 = arith.negf %114 : vector<8x512xf32>
    %116 = math.exp %115 : vector<8x512xf32>
    %cst_37 = arith.constant 1.000000e+00 : f32
    %117 = vector.broadcast %cst_37 : f32 to vector<8x512xf32>
    %118 = arith.addf %117, %116 : vector<8x512xf32>
    %119 = arith.divf %117, %118 : vector<8x512xf32>
    %120 = vector.extract_strided_slice %113 {offsets = [8, 0], sizes = [8, 512], strides = [1, 1]} : vector<24x512xf32> to vector<8x512xf32>
    %121 = arith.negf %120 : vector<8x512xf32>
    %122 = math.exp %121 : vector<8x512xf32>
    %cst_38 = arith.constant 1.000000e+00 : f32
    %123 = vector.broadcast %cst_38 : f32 to vector<8x512xf32>
    %124 = arith.addf %123, %122 : vector<8x512xf32>
    %125 = arith.divf %123, %124 : vector<8x512xf32>
    %126 = arith.mulf %125, %16 : vector<8x512xf32>
    %c17_i32_39 = arith.constant 17 : i32
    %127 = tpu.dynamic_rotate %126 by %c17_i32_39 dim 1 : vector<8x512xf32>, i32 -> vector<8x512xf32>
    %c1_i32_40 = arith.constant 1 : i32
    %128 = vector.broadcast %c1_i32_40 : i32 to vector<1x512xi32>
    %129 = arith.cmpi sge, %6, %128 : vector<1x512xi32>
    %c1_i32_41 = arith.constant 1 : i32
    %130 = vector.broadcast %c1_i32_41 : i32 to vector<1x512xi32>
    %131 = arith.cmpi sge, %4, %130 : vector<1x512xi32>
    %132 = arith.andi %129, %131 : vector<1x512xi1>
    %133 = arith.extui %132 : vector<1x512xi1> to vector<1x512xi32>
    %134 = arith.sitofp %133 : vector<1x512xi32> to vector<1x512xf32>
    %135 = vector.broadcast %134 : vector<1x512xf32> to vector<8x512xf32>
    %136 = arith.mulf %127, %135 : vector<8x512xf32>
    %c0_42 = arith.constant 0 : index
    %c0_43 = arith.constant 0 : index
    %137 = vector.load %arg7[%c0_42, %c0_43] : memref<72x512xf32, #tpu.memory_space<vmem>>, vector<8x512xf32>
    tpu.vector_store %arg7[%c0_42, %c0_43], %136 {strides = array<i32>} : memref<72x512xf32, #tpu.memory_space<vmem>>, vector<8x512xf32>,
    %c16_i32_44 = arith.constant 16 : i32
    %138 = tpu.dynamic_rotate %126 by %c16_i32_44 dim 1 : vector<8x512xf32>, i32 -> vector<8x512xf32>
    %c1_i32_45 = arith.constant 1 : i32
    %139 = vector.broadcast %c1_i32_45 : i32 to vector<1x512xi32>
    %140 = arith.cmpi sge, %6, %139 : vector<1x512xi32>
    %141 = arith.extui %140 : vector<1x512xi1> to vector<1x512xi32>
    %142 = arith.sitofp %141 : vector<1x512xi32> to vector<1x512xf32>
    %143 = vector.broadcast %142 : vector<1x512xf32> to vector<8x512xf32>
    %144 = arith.mulf %138, %143 : vector<8x512xf32>
    %c8 = arith.constant 8 : index
    %c0_46 = arith.constant 0 : index
    %145 = vector.load %arg7[%c8, %c0_46] : memref<72x512xf32, #tpu.memory_space<vmem>>, vector<8x512xf32>
    tpu.vector_store %arg7[%c8, %c0_46], %144 {strides = array<i32>} : memref<72x512xf32, #tpu.memory_space<vmem>>, vector<8x512xf32>,
    %c15_i32_47 = arith.constant 15 : i32
    %146 = tpu.dynamic_rotate %126 by %c15_i32_47 dim 1 : vector<8x512xf32>, i32 -> vector<8x512xf32>
    %c1_i32_48 = arith.constant 1 : i32
    %147 = vector.broadcast %c1_i32_48 : i32 to vector<1x512xi32>
    %148 = arith.cmpi sge, %6, %147 : vector<1x512xi32>
    %c14_i32_49 = arith.constant 14 : i32
    %149 = vector.broadcast %c14_i32_49 : i32 to vector<1x512xi32>
    %150 = arith.cmpi sle, %4, %149 : vector<1x512xi32>
    %151 = arith.andi %148, %150 : vector<1x512xi1>
    %152 = arith.extui %151 : vector<1x512xi1> to vector<1x512xi32>
    %153 = arith.sitofp %152 : vector<1x512xi32> to vector<1x512xf32>
    %154 = vector.broadcast %153 : vector<1x512xf32> to vector<8x512xf32>
    %155 = arith.mulf %146, %154 : vector<8x512xf32>
    %c16_50 = arith.constant 16 : index
    %c0_51 = arith.constant 0 : index
    %156 = vector.load %arg7[%c16_50, %c0_51] : memref<72x512xf32, #tpu.memory_space<vmem>>, vector<8x512xf32>
    tpu.vector_store %arg7[%c16_50, %c0_51], %155 {strides = array<i32>} : memref<72x512xf32, #tpu.memory_space<vmem>>, vector<8x512xf32>,
    %c1_i32_52 = arith.constant 1 : i32
    %157 = tpu.dynamic_rotate %126 by %c1_i32_52 dim 1 : vector<8x512xf32>, i32 -> vector<8x512xf32>
    %c1_i32_53 = arith.constant 1 : i32
    %158 = vector.broadcast %c1_i32_53 : i32 to vector<1x512xi32>
    %159 = arith.cmpi sge, %4, %158 : vector<1x512xi32>
    %160 = arith.extui %159 : vector<1x512xi1> to vector<1x512xi32>
    %161 = arith.sitofp %160 : vector<1x512xi32> to vector<1x512xf32>
    %162 = vector.broadcast %161 : vector<1x512xf32> to vector<8x512xf32>
    %163 = arith.mulf %157, %162 : vector<8x512xf32>
    %c24 = arith.constant 24 : index
    %c0_54 = arith.constant 0 : index
    %164 = vector.load %arg7[%c24, %c0_54] : memref<72x512xf32, #tpu.memory_space<vmem>>, vector<8x512xf32>
    tpu.vector_store %arg7[%c24, %c0_54], %163 {strides = array<i32>} : memref<72x512xf32, #tpu.memory_space<vmem>>, vector<8x512xf32>,
    %c32_55 = arith.constant 32 : index
    %c0_56 = arith.constant 0 : index
    %165 = vector.load %arg7[%c32_55, %c0_56] : memref<72x512xf32, #tpu.memory_space<vmem>>, vector<8x512xf32>
    tpu.vector_store %arg7[%c32_55, %c0_56], %126 {strides = array<i32>} : memref<72x512xf32, #tpu.memory_space<vmem>>, vector<8x512xf32>,
    %c511_i32_57 = arith.constant 511 : i32
    %166 = tpu.dynamic_rotate %126 by %c511_i32_57 dim 1 : vector<8x512xf32>, i32 -> vector<8x512xf32>
    %c14_i32_58 = arith.constant 14 : i32
    %167 = vector.broadcast %c14_i32_58 : i32 to vector<1x512xi32>
    %168 = arith.cmpi sle, %4, %167 : vector<1x512xi32>
    %169 = arith.extui %168 : vector<1x512xi1> to vector<1x512xi32>
    %170 = arith.sitofp %169 : vector<1x512xi32> to vector<1x512xf32>
    %171 = vector.broadcast %170 : vector<1x512xf32> to vector<8x512xf32>
    %172 = arith.mulf %166, %171 : vector<8x512xf32>
    %c40 = arith.constant 40 : index
    %c0_59 = arith.constant 0 : index
    %173 = vector.load %arg7[%c40, %c0_59] : memref<72x512xf32, #tpu.memory_space<vmem>>, vector<8x512xf32>
    tpu.vector_store %arg7[%c40, %c0_59], %172 {strides = array<i32>} : memref<72x512xf32, #tpu.memory_space<vmem>>, vector<8x512xf32>,
    %c497_i32_60 = arith.constant 497 : i32
    %174 = tpu.dynamic_rotate %126 by %c497_i32_60 dim 1 : vector<8x512xf32>, i32 -> vector<8x512xf32>
    %c14_i32_61 = arith.constant 14 : i32
    %175 = vector.broadcast %c14_i32_61 : i32 to vector<1x512xi32>
    %176 = arith.cmpi sle, %6, %175 : vector<1x512xi32>
    %c1_i32_62 = arith.constant 1 : i32
    %177 = vector.broadcast %c1_i32_62 : i32 to vector<1x512xi32>
    %178 = arith.cmpi sge, %4, %177 : vector<1x512xi32>
    %179 = arith.andi %176, %178 : vector<1x512xi1>
    %180 = arith.extui %179 : vector<1x512xi1> to vector<1x512xi32>
    %181 = arith.sitofp %180 : vector<1x512xi32> to vector<1x512xf32>
    %182 = vector.broadcast %181 : vector<1x512xf32> to vector<8x512xf32>
    %183 = arith.mulf %174, %182 : vector<8x512xf32>
    %c48_63 = arith.constant 48 : index
    %c0_64 = arith.constant 0 : index
    %184 = vector.load %arg7[%c48_63, %c0_64] : memref<72x512xf32, #tpu.memory_space<vmem>>, vector<8x512xf32>
    tpu.vector_store %arg7[%c48_63, %c0_64], %183 {strides = array<i32>} : memref<72x512xf32, #tpu.memory_space<vmem>>, vector<8x512xf32>,
    %c496_i32_65 = arith.constant 496 : i32
    %185 = tpu.dynamic_rotate %126 by %c496_i32_65 dim 1 : vector<8x512xf32>, i32 -> vector<8x512xf32>
    %c14_i32_66 = arith.constant 14 : i32
    %186 = vector.broadcast %c14_i32_66 : i32 to vector<1x512xi32>
    %187 = arith.cmpi sle, %6, %186 : vector<1x512xi32>
    %188 = arith.extui %187 : vector<1x512xi1> to vector<1x512xi32>
    %189 = arith.sitofp %188 : vector<1x512xi32> to vector<1x512xf32>
    %190 = vector.broadcast %189 : vector<1x512xf32> to vector<8x512xf32>
    %191 = arith.mulf %185, %190 : vector<8x512xf32>
    %c56 = arith.constant 56 : index
    %c0_67 = arith.constant 0 : index
    %192 = vector.load %arg7[%c56, %c0_67] : memref<72x512xf32, #tpu.memory_space<vmem>>, vector<8x512xf32>
    tpu.vector_store %arg7[%c56, %c0_67], %191 {strides = array<i32>} : memref<72x512xf32, #tpu.memory_space<vmem>>, vector<8x512xf32>,
    %c495_i32_68 = arith.constant 495 : i32
    %193 = tpu.dynamic_rotate %126 by %c495_i32_68 dim 1 : vector<8x512xf32>, i32 -> vector<8x512xf32>
    %c14_i32_69 = arith.constant 14 : i32
    %194 = vector.broadcast %c14_i32_69 : i32 to vector<1x512xi32>
    %195 = arith.cmpi sle, %6, %194 : vector<1x512xi32>
    %c14_i32_70 = arith.constant 14 : i32
    %196 = vector.broadcast %c14_i32_70 : i32 to vector<1x512xi32>
    %197 = arith.cmpi sle, %4, %196 : vector<1x512xi32>
    %198 = arith.andi %195, %197 : vector<1x512xi1>
    %199 = arith.extui %198 : vector<1x512xi1> to vector<1x512xi32>
    %200 = arith.sitofp %199 : vector<1x512xi32> to vector<1x512xf32>
    %201 = vector.broadcast %200 : vector<1x512xf32> to vector<8x512xf32>
    %202 = arith.mulf %193, %201 : vector<8x512xf32>
    %c64_71 = arith.constant 64 : index
    %c0_72 = arith.constant 0 : index
    %203 = vector.load %arg7[%c64_71, %c0_72] : memref<72x512xf32, #tpu.memory_space<vmem>>, vector<8x512xf32>
    tpu.vector_store %arg7[%c64_71, %c0_72], %202 {strides = array<i32>} : memref<72x512xf32, #tpu.memory_space<vmem>>, vector<8x512xf32>,
    %204 = vector.extract_strided_slice %113 {offsets = [16, 0], sizes = [8, 512], strides = [1, 1]} : vector<24x512xf32> to vector<8x512xf32>
    %c0_73 = arith.constant 0 : index
    %c0_74 = arith.constant 0 : index
    %205 = vector.load %arg4[%c0_73, %c0_74] : memref<8x72xbf16, #tpu.memory_space<vmem>>, vector<8x72xbf16>
    %c0_75 = arith.constant 0 : index
    %c0_76 = arith.constant 0 : index
    %206 = vector.load %arg7[%c0_75, %c0_76] : memref<72x512xf32, #tpu.memory_space<vmem>>, vector<72x512xf32>
    %207 = arith.truncf %206 : vector<72x512xf32> to vector<72x512xbf16>
    %cst_77 = arith.constant dense<0.000000e+00> : vector<8x512xf32>
    %208 = tpu.matmul %205, %207, %cst_77 {dimension_numbers = #tpu.dot_dimension_numbers<[1], [0], [0], [1], [0, 0, 1, 1], [], []>} : vector<8x72xbf16>, vector<72x512xbf16>, vector<8x512xf32> -> vector<8x512xf32>
    %209 = arith.addf %204, %208 : vector<8x512xf32>
    %210 = math.tanh %209 : vector<8x512xf32>
    %cst_78 = arith.constant 1.000000e+00 : f32
    %211 = vector.broadcast %cst_78 : f32 to vector<8x512xf32>
    %212 = arith.subf %211, %119 : vector<8x512xf32>
    %213 = arith.mulf %212, %16 : vector<8x512xf32>
    %214 = arith.mulf %119, %210 : vector<8x512xf32>
    %215 = arith.addf %213, %214 : vector<8x512xf32>
    %216 = vector.extract_strided_slice %215 {offsets = [0, 0], sizes = [8, 256], strides = [1, 1]} : vector<8x512xf32> to vector<8x256xf32>
    %c0_79 = arith.constant 0 : index
    %c0_80 = arith.constant 0 : index
    %c0_81 = arith.constant 0 : index
    %217 = vector.load %arg5[%c0_79, %c0_80, %c0_81] : memref<2x8x256xf32, #tpu.memory_space<vmem>>, vector<1x8x256xf32>
    %218 = vector.shape_cast %217 : vector<1x8x256xf32> to vector<8x256xf32>
    %219 = vector.shape_cast %216 : vector<8x256xf32> to vector<1x8x256xf32>
    tpu.vector_store %arg5[%c0_79, %c0_80, %c0_81], %219 {strides = array<i32>} : memref<2x8x256xf32, #tpu.memory_space<vmem>>, vector<1x8x256xf32>,
    %220 = vector.extract_strided_slice %215 {offsets = [0, 256], sizes = [8, 256], strides = [1, 1]} : vector<8x512xf32> to vector<8x256xf32>
    %c1_82 = arith.constant 1 : index
    %c0_83 = arith.constant 0 : index
    %c0_84 = arith.constant 0 : index
    %221 = vector.load %arg5[%c1_82, %c0_83, %c0_84] : memref<2x8x256xf32, #tpu.memory_space<vmem>>, vector<1x8x256xf32>
    %222 = vector.shape_cast %221 : vector<1x8x256xf32> to vector<8x256xf32>
    %223 = vector.shape_cast %220 : vector<8x256xf32> to vector<1x8x256xf32>
    tpu.vector_store %arg5[%c1_82, %c0_83, %c0_84], %223 {strides = array<i32>} : memref<2x8x256xf32, #tpu.memory_space<vmem>>, vector<1x8x256xf32>,
    return
  }
  func.func @transform_0(%arg0: i32) -> (i32, i32, i32) {
    %c0_i32 = arith.constant 0 : i32
    %c0_i32_0 = arith.constant 0 : i32
    %c0_i32_1 = arith.constant 0 : i32
    %c0_i32_2 = arith.constant 0 : i32
    return %c0_i32, %c0_i32_0, %c0_i32_1 : i32, i32, i32
  }
  func.func @transform_1(%arg0: i32) -> (i32, i32, i32) {
    %c0_i32 = arith.constant 0 : i32
    %c0_i32_0 = arith.constant 0 : i32
    %c0_i32_1 = arith.constant 0 : i32
    %c0_i32_2 = arith.constant 0 : i32
    return %c0_i32, %c0_i32_0, %c0_i32_1 : i32, i32, i32
  }
  func.func @transform_2(%arg0: i32) -> (i32, i32) {
    %c0_i32 = arith.constant 0 : i32
    %c0_i32_0 = arith.constant 0 : i32
    %c0_i32_1 = arith.constant 0 : i32
    return %c0_i32, %c0_i32_0 : i32, i32
  }
  func.func @transform_3(%arg0: i32) -> (i32, i32) {
    %c0_i32 = arith.constant 0 : i32
    %c0_i32_0 = arith.constant 0 : i32
    %c0_i32_1 = arith.constant 0 : i32
    return %c0_i32, %c0_i32_0 : i32, i32
  }
  func.func @transform_4(%arg0: i32) -> (i32, i32, i32) {
    %c0_i32 = arith.constant 0 : i32
    %c0_i32_0 = arith.constant 0 : i32
    %c0_i32_1 = arith.constant 0 : i32
    %c0_i32_2 = arith.constant 0 : i32
    return %c0_i32, %c0_i32_0, %c0_i32_1 : i32, i32, i32
  }
}

</mosaic_0001>

<llo_original>
// kernel: convgru_cell.1
$region0: #{convgru_cell.1}
  #allocation0 [shape = 'u32[]', space=smem, size = 0x4, offset = 0x4, fixed_abs, tag = 'smem constant byte address 0x4 - core index']
  #allocation1 [shape = 'u32[144,128]{1,0:T(1,128)}', space=vmem, size = 0x12000, scoped, tag = 'internal scratch']
  #allocation2 [shape = 'bf16[160,512]{1,0:T(8,128)(2,1)}', space=vmem, size = 0x28000, scoped, tag = 'scratch operand']
  #allocation3 [shape = 'f32[72,512]{1,0:T(8,128)}', space=vmem, size = 0x24000, scoped, tag = 'scratch operand']
  %s0 = inlined_call_operand.vmem [shape: f32[2,8,256], index: 0, kind: input, shape index: {}]
  %s1 = inlined_call_operand.vmem [shape: f32[2,8,256], index: 1, kind: input, shape index: {}, may-alias: {1,4}]
  %s2 = inlined_call_operand.vmem [shape: bf16[24,160], index: 2, kind: input, shape index: {}]
  %s3 = inlined_call_operand.vmem [shape: bf16[8,72], index: 3, kind: input, shape index: {}]
  %s4 = inlined_call_operand.vmem [shape: f32[2,8,256], index: 4, kind: output, shape index: {}, may-alias: {1,4}]
  %s5 = sld [smem:[#allocation0]]
  $region26: #{convgru_cell.1} parent=0
    _
  %s7 = ssub.s32 1, %s5
  %s8 = scalar_select 0, %s7, %s5
  // Predicated region
  $region2: #{convgru_cell.1} parent=0 // pred_check
    _
  $region3: #{convgru_cell.1} parent=0 // pred_check_branch
    %10 = sbr.rel (0) target = $region5
  $region4: #{convgru_cell.1} parent=0 // pred_region
    _
  $region5: #{convgru_cell.1} parent=0 // pred_fallthru
    _
  // Predicated region
  $region6: #{convgru_cell.1} parent=0 // pred_check
    _
  $region7: #{convgru_cell.1} parent=0 // pred_check_branch
    %12 = sbr.rel (0) target = $region9
  $region8: #{convgru_cell.1} parent=0 // pred_region
    _
  $region9: #{convgru_cell.1} parent=0 // pred_fallthru
    _
  // Predicated region
  $region10: #{convgru_cell.1} parent=0 // pred_check
    _
  $region11: #{convgru_cell.1} parent=0 // pred_check_branch
    %14 = sbr.rel (0) target = $region13
  $region12: #{convgru_cell.1} parent=0 // pred_region
    _
  $region13: #{convgru_cell.1} parent=0 // pred_fallthru
    _
  // Predicated region
  $region14: #{convgru_cell.1} parent=0 // pred_check
    _
  $region15: #{convgru_cell.1} parent=0 // pred_check_branch
    %16 = sbr.rel (0) target = $region17
  $region16: #{convgru_cell.1} parent=0 // pred_region
    _
  $region17: #{convgru_cell.1} parent=0 // pred_fallthru
    _
  %v18 = vlaneseq
  %v19 = vand.u32 %v18, 127
  %v20 = vadd.s32 %v19, 128
  %v21 = vadd.s32 %v19, 256
  %v22 = vadd.s32 %v19, 384
  %v23 = vand.u32 %v19, 255
  %v24 = vand.u32 %v20, 255
  %v25 = vand.u32 %v21, 255
  %v26 = vand.u32 %v22, 255
  %v27 = vand.u32 %v23, 15
  %v28 = vand.u32 %v24, 15
  %v29 = vand.u32 %v25, 15
  %v30 = vand.u32 %v26, 15
  %v31 = vshra.s32 %v23, 4
  %v32 = vshra.s32 %v24, 4
  %v33 = vshra.s32 %v25, 4
  %v34 = vshra.s32 %v26, 4
  %v35 = vld [vmem:[%s0] sm:$0xff]
  %v36 = vld [vmem:[%s0 + $0x8] sm:$0xff]
  %s37 = scalar_lea.vmem %s0, 16
  %v38 = vld [vmem:[%s37] sm:$0xff]
  %v39 = vld [vmem:[%s37 + $0x8] sm:$0xff]
  %v40 = vld [vmem:[%s1] sm:$0xff]
  %v41 = vld [vmem:[%s1 + $0x8] sm:$0xff]
  %s42 = scalar_lea.vmem %s1, 16
  %v43 = vld [vmem:[%s42] sm:$0xff]
  %v44 = vld [vmem:[%s42 + $0x8] sm:$0xff]
  %45 = vrot.lane.b32.xlu0 %v35, 17
  %v46 = vpop.permute.xlu0 %45
  %47 = vrot.lane.b32.xlu0 %v40, 17
  %v48 = vpop.permute.xlu0 %47
  %49 = vrot.lane.b32.xlu0 %v36, 17
  %v50 = vpop.permute.xlu0 %49
  %51 = vrot.lane.b32.xlu0 %v41, 17
  %v52 = vpop.permute.xlu0 %51
  %53 = vrot.lane.b32.xlu0 %v38, 17
  %v54 = vpop.permute.xlu0 %53
  %55 = vrot.lane.b32.xlu0 %v43, 17
  %v56 = vpop.permute.xlu0 %55
  %57 = vrot.lane.b32.xlu0 %v39, 17
  %v58 = vpop.permute.xlu0 %57
  %59 = vrot.lane.b32.xlu0 %v44, 17
  %v60 = vpop.permute.xlu0 %59
  %vm61 = vcmp.lt.s32.totalorder %v19, 17
  %v62 = vsel %vm61, %v54, %v58
  %v63 = vsel %vm61, %v56, %v60
  %v64 = vsel %vm61, %v50, %v54
  %v65 = vsel %vm61, %v52, %v56
  %v66 = vsel %vm61, %v46, %v50
  %v67 = vsel %vm61, %v48, %v52
  %v68 = vsel %vm61, %v58, %v46
  %v69 = vsel %vm61, %v60, %v48
  %vm70 = vcmp.ge.s32.totalorder %v31, 1
  %vm71 = vcmp.ge.s32.totalorder %v32, 1
  %vm72 = vcmp.ge.s32.totalorder %v33, 1
  %vm73 = vcmp.ge.s32.totalorder %v34, 1
  %vm74 = vcmp.ge.s32.totalorder %v27, 1
  %vm75 = vcmp.ge.s32.totalorder %v28, 1
  %vm76 = vcmp.ge.s32.totalorder %v29, 1
  %vm77 = vcmp.ge.s32.totalorder %v30, 1
  %vm78 = vmand %vm70, %vm74
  %vm79 = vmand %vm71, %vm75
  %vm80 = vmand %vm72, %vm76
  %vm81 = vmand %vm73, %vm77
  %v82 = vsel %vm78, 1, 0
  %v83 = vsel %vm79, 1, 0
  %v84 = vsel %vm80, 1, 0
  %v85 = vsel %vm81, 1, 0
  %v86 = vcvt.s32.f32 %v82
  %v87 = vcvt.s32.f32 %v83
  %v88 = vcvt.s32.f32 %v84
  %v89 = vcvt.s32.f32 %v85
  %v90 = vmul.f32 %v68, %v86
  %v91 = vmul.f32 %v66, %v87
  %v92 = vmul.f32 %v64, %v88
  %v93 = vmul.f32 %v62, %v89
  %v94 = vmul.f32 %v69, %v86
  %v95 = vmul.f32 %v67, %v87
  %v96 = vmul.f32 %v65, %v88
  %v97 = vmul.f32 %v63, %v89
  %v98 = vpack.c.bf16 %v94, %v90
  %v99 = vpack.c.bf16 %v95, %v91
  %v100 = vpack.c.bf16 %v96, %v92
  %v101 = vpack.c.bf16 %v97, %v93
  %v106 = vunpack.c.l.b16 %v98
  %v107 = vunpack.c.l.b16 %v99
  %v108 = vunpack.c.l.b16 %v100
  %v109 = vunpack.c.l.b16 %v101
  %v110 = vunpack.c.h.b16 %v98
  %v111 = vunpack.c.h.b16 %v99
  %v112 = vunpack.c.h.b16 %v100
  %v113 = vunpack.c.h.b16 %v101
  %v114 = vpack.c.b16 %v107, %v106
  %v115 = vpack.c.b16 %v109, %v108
  %v116 = vpack.c.b16 %v111, %v110
  %v117 = vpack.c.b16 %v113, %v112
  %122 = vst [vmem:[#allocation2] sm:$0xff] %v114
  %123 = vst [vmem:[#allocation2 + $0x8] sm:$0xff] %v115
  %124 = vst [vmem:[#allocation2 + $0x10] sm:$0xff] %v116
  %125 = vst [vmem:[#allocation2 + $0x18] sm:$0xff] %v117
  %126 = vrot.lane.b32.xlu0 %v35, 16
  %v127 = vpop.permute.xlu0 %126
  %128 = vrot.lane.b32.xlu0 %v40, 16
  %v129 = vpop.permute.xlu0 %128
  %130 = vrot.lane.b32.xlu0 %v36, 16
  %v131 = vpop.permute.xlu0 %130
  %132 = vrot.lane.b32.xlu0 %v41, 16
  %v133 = vpop.permute.xlu0 %132
  %134 = vrot.lane.b32.xlu0 %v38, 16
  %v135 = vpop.permute.xlu0 %134
  %136 = vrot.lane.b32.xlu0 %v43, 16
  %v137 = vpop.permute.xlu0 %136
  %138 = vrot.lane.b32.xlu0 %v39, 16
  %v139 = vpop.permute.xlu0 %138
  %140 = vrot.lane.b32.xlu0 %v44, 16
  %v141 = vpop.permute.xlu0 %140
  %vm142 = vcmp.lt.s32.totalorder %v19, 16
  %v143 = vsel %vm142, %v135, %v139
  %v144 = vsel %vm142, %v137, %v141
  %v145 = vsel %vm142, %v131, %v135
  %v146 = vsel %vm142, %v133, %v137
  %v147 = vsel %vm142, %v127, %v131
  %v148 = vsel %vm142, %v129, %v133
  %v149 = vsel %vm142, %v139, %v127
  %v150 = vsel %vm142, %v141, %v129
  %v151 = vsel %vm70, 1, 0
  %v152 = vsel %vm71, 1, 0
  %v153 = vsel %vm72, 1, 0
  %v154 = vsel %vm73, 1, 0
  %v155 = vcvt.s32.f32 %v151
  %v156 = vcvt.s32.f32 %v152
  %v157 = vcvt.s32.f32 %v153
  %v158 = vcvt.s32.f32 %v154
  %v159 = vmul.f32 %v149, %v155
  %v160 = vmul.f32 %v147, %v156
  %v161 = vmul.f32 %v145, %v157
  %v162 = vmul.f32 %v143, %v158
  %v163 = vmul.f32 %v150, %v155
  %v164 = vmul.f32 %v148, %v156
  %v165 = vmul.f32 %v146, %v157
  %v166 = vmul.f32 %v144, %v158
  %v167 = vpack.c.bf16 %v163, %v159
  %v168 = vpack.c.bf16 %v164, %v160
  %v169 = vpack.c.bf16 %v165, %v161
  %v170 = vpack.c.bf16 %v166, %v162
  %v175 = vunpack.c.l.b16 %v167
  %v176 = vunpack.c.l.b16 %v168
  %v177 = vunpack.c.l.b16 %v169
  %v178 = vunpack.c.l.b16 %v170
  %v179 = vunpack.c.h.b16 %v167
  %v180 = vunpack.c.h.b16 %v168
  %v181 = vunpack.c.h.b16 %v169
  %v182 = vunpack.c.h.b16 %v170
  %v183 = vpack.c.b16 %v176, %v175
  %v184 = vpack.c.b16 %v178, %v177
  %v185 = vpack.c.b16 %v180, %v179
  %v186 = vpack.c.b16 %v182, %v181
  %191 = vst [vmem:[#allocation2 + $0x20] sm:$0xff] %v183
  %192 = vst [vmem:[#allocation2 + $0x28] sm:$0xff] %v184
  %193 = vst [vmem:[#allocation2 + $0x30] sm:$0xff] %v185
  %194 = vst [vmem:[#allocation2 + $0x38] sm:$0xff] %v186
  %195 = vrot.lane.b32.xlu0 %v35, 15
  %v196 = vpop.permute.xlu0 %195
  %197 = vrot.lane.b32.xlu0 %v40, 15
  %v198 = vpop.permute.xlu0 %197
  %199 = vrot.lane.b32.xlu0 %v36, 15
  %v200 = vpop.permute.xlu0 %199
  %201 = vrot.lane.b32.xlu0 %v41, 15
  %v202 = vpop.permute.xlu0 %201
  %203 = vrot.lane.b32.xlu0 %v38, 15
  %v204 = vpop.permute.xlu0 %203
  %205 = vrot.lane.b32.xlu0 %v43, 15
  %v206 = vpop.permute.xlu0 %205
  %207 = vrot.lane.b32.xlu0 %v39, 15
  %v208 = vpop.permute.xlu0 %207
  %209 = vrot.lane.b32.xlu0 %v44, 15
  %v210 = vpop.permute.xlu0 %209
  %vm211 = vcmp.lt.s32.totalorder %v19, 15
  %v212 = vsel %vm211, %v204, %v208
  %v213 = vsel %vm211, %v206, %v210
  %v214 = vsel %vm211, %v200, %v204
  %v215 = vsel %vm211, %v202, %v206
  %v216 = vsel %vm211, %v196, %v200
  %v217 = vsel %vm211, %v198, %v202
  %v218 = vsel %vm211, %v208, %v196
  %v219 = vsel %vm211, %v210, %v198
  %vm220 = vcmp.le.s32.totalorder %v27, 14
  %vm221 = vcmp.le.s32.totalorder %v28, 14
  %vm222 = vcmp.le.s32.totalorder %v29, 14
  %vm223 = vcmp.le.s32.totalorder %v30, 14
  %vm224 = vmand %vm70, %vm220
  %vm225 = vmand %vm71, %vm221
  %vm226 = vmand %vm72, %vm222
  %vm227 = vmand %vm73, %vm223
  %v228 = vsel %vm224, 1, 0
  %v229 = vsel %vm225, 1, 0
  %v230 = vsel %vm226, 1, 0
  %v231 = vsel %vm227, 1, 0
  %v232 = vcvt.s32.f32 %v228
  %v233 = vcvt.s32.f32 %v229
  %v234 = vcvt.s32.f32 %v230
  %v235 = vcvt.s32.f32 %v231
  %v236 = vmul.f32 %v218, %v232
  %v237 = vmul.f32 %v216, %v233
  %v238 = vmul.f32 %v214, %v234
  %v239 = vmul.f32 %v212, %v235
  %v240 = vmul.f32 %v219, %v232
  %v241 = vmul.f32 %v217, %v233
  %v242 = vmul.f32 %v215, %v234
  %v243 = vmul.f32 %v213, %v235
  %v244 = vpack.c.bf16 %v240, %v236
  %v245 = vpack.c.bf16 %v241, %v237
  %v246 = vpack.c.bf16 %v242, %v238
  %v247 = vpack.c.bf16 %v243, %v239
  %v252 = vunpack.c.l.b16 %v244
  %v253 = vunpack.c.l.b16 %v245
  %v254 = vunpack.c.l.b16 %v246
  %v255 = vunpack.c.l.b16 %v247
  %v256 = vunpack.c.h.b16 %v244
  %v257 = vunpack.c.h.b16 %v245
  %v258 = vunpack.c.h.b16 %v246
  %v259 = vunpack.c.h.b16 %v247
  %v260 = vpack.c.b16 %v253, %v252
  %v261 = vpack.c.b16 %v255, %v254
  %v262 = vpack.c.b16 %v257, %v256
  %v263 = vpack.c.b16 %v259, %v258
  %268 = vst [vmem:[#allocation2 + $0x40] sm:$0xff] %v260
  %269 = vst [vmem:[#allocation2 + $0x48] sm:$0xff] %v261
  %270 = vst [vmem:[#allocation2 + $0x50] sm:$0xff] %v262
  %271 = vst [vmem:[#allocation2 + $0x58] sm:$0xff] %v263
  %272 = vrot.lane.b32.xlu0 %v35, 1
  %v273 = vpop.permute.xlu0 %272
  %274 = vrot.lane.b32.xlu0 %v40, 1
  %v275 = vpop.permute.xlu0 %274
  %276 = vrot.lane.b32.xlu0 %v36, 1
  %v277 = vpop.permute.xlu0 %276
  %278 = vrot.lane.b32.xlu0 %v41, 1
  %v279 = vpop.permute.xlu0 %278
  %280 = vrot.lane.b32.xlu0 %v38, 1
  %v281 = vpop.permute.xlu0 %280
  %282 = vrot.lane.b32.xlu0 %v43, 1
  %v283 = vpop.permute.xlu0 %282
  %284 = vrot.lane.b32.xlu0 %v39, 1
  %v285 = vpop.permute.xlu0 %284
  %286 = vrot.lane.b32.xlu0 %v44, 1
  %v287 = vpop.permute.xlu0 %286
  %vm288 = vcmp.lt.s32.totalorder %v19, 1
  %v289 = vsel %vm288, %v281, %v285
  %v290 = vsel %vm288, %v283, %v287
  %v291 = vsel %vm288, %v277, %v281
  %v292 = vsel %vm288, %v279, %v283
  %v293 = vsel %vm288, %v273, %v277
  %v294 = vsel %vm288, %v275, %v279
  %v295 = vsel %vm288, %v285, %v273
  %v296 = vsel %vm288, %v287, %v275
  %v297 = vsel %vm74, 1, 0
  %v298 = vsel %vm75, 1, 0
  %v299 = vsel %vm76, 1, 0
  %v300 = vsel %vm77, 1, 0
  %v301 = vcvt.s32.f32 %v297
  %v302 = vcvt.s32.f32 %v298
  %v303 = vcvt.s32.f32 %v299
  %v304 = vcvt.s32.f32 %v300
  %v305 = vmul.f32 %v295, %v301
  %v306 = vmul.f32 %v293, %v302
  %v307 = vmul.f32 %v291, %v303
  %v308 = vmul.f32 %v289, %v304
  %v309 = vmul.f32 %v296, %v301
  %v310 = vmul.f32 %v294, %v302
  %v311 = vmul.f32 %v292, %v303
  %v312 = vmul.f32 %v290, %v304
  %v313 = vpack.c.bf16 %v309, %v305
  %v314 = vpack.c.bf16 %v310, %v306
  %v315 = vpack.c.bf16 %v311, %v307
  %v316 = vpack.c.bf16 %v312, %v308
  %v321 = vunpack.c.l.b16 %v313
  %v322 = vunpack.c.l.b16 %v314
  %v323 = vunpack.c.l.b16 %v315
  %v324 = vunpack.c.l.b16 %v316
  %v325 = vunpack.c.h.b16 %v313
  %v326 = vunpack.c.h.b16 %v314
  %v327 = vunpack.c.h.b16 %v315
  %v328 = vunpack.c.h.b16 %v316
  %v329 = vpack.c.b16 %v322, %v321
  %v330 = vpack.c.b16 %v324, %v323
  %v331 = vpack.c.b16 %v326, %v325
  %v332 = vpack.c.b16 %v328, %v327
  %337 = vst [vmem:[#allocation2 + $0x60] sm:$0xff] %v329
  %338 = vst [vmem:[#allocation2 + $0x68] sm:$0xff] %v330
  %339 = vst [vmem:[#allocation2 + $0x70] sm:$0xff] %v331
  %340 = vst [vmem:[#allocation2 + $0x78] sm:$0xff] %v332
  %v341 = vpack.c.bf16 %v40, %v35
  %v342 = vpack.c.bf16 %v41, %v36
  %v343 = vpack.c.bf16 %v43, %v38
  %v344 = vpack.c.bf16 %v44, %v39
  %v349 = vunpack.c.l.b16 %v341
  %v350 = vunpack.c.l.b16 %v342
  %v351 = vunpack.c.l.b16 %v343
  %v352 = vunpack.c.l.b16 %v344
  %v353 = vunpack.c.h.b16 %v341
  %v354 = vunpack.c.h.b16 %v342
  %v355 = vunpack.c.h.b16 %v343
  %v356 = vunpack.c.h.b16 %v344
  %v357 = vpack.c.b16 %v350, %v349
  %v358 = vpack.c.b16 %v352, %v351
  %v359 = vpack.c.b16 %v354, %v353
  %v360 = vpack.c.b16 %v356, %v355
  %365 = vst [vmem:[#allocation2 + $0x80] sm:$0xff] %v357
  %366 = vst [vmem:[#allocation2 + $0x88] sm:$0xff] %v358
  %367 = vst [vmem:[#allocation2 + $0x90] sm:$0xff] %v359
  %368 = vst [vmem:[#allocation2 + $0x98] sm:$0xff] %v360
  %369 = vrot.lane.b32.xlu0 %v35, 127
  %v370 = vpop.permute.xlu0 %369
  %371 = vrot.lane.b32.xlu0 %v40, 127
  %v372 = vpop.permute.xlu0 %371
  %373 = vrot.lane.b32.xlu0 %v36, 127
  %v374 = vpop.permute.xlu0 %373
  %375 = vrot.lane.b32.xlu0 %v41, 127
  %v376 = vpop.permute.xlu0 %375
  %377 = vrot.lane.b32.xlu0 %v38, 127
  %v378 = vpop.permute.xlu0 %377
  %379 = vrot.lane.b32.xlu0 %v43, 127
  %v380 = vpop.permute.xlu0 %379
  %381 = vrot.lane.b32.xlu0 %v39, 127
  %v382 = vpop.permute.xlu0 %381
  %383 = vrot.lane.b32.xlu0 %v44, 127
  %v384 = vpop.permute.xlu0 %383
  %vm385 = vcmp.lt.s32.totalorder %v19, 127
  %v386 = vsel %vm385, %v378, %v382
  %v387 = vsel %vm385, %v380, %v384
  %v388 = vsel %vm385, %v374, %v378
  %v389 = vsel %vm385, %v376, %v380
  %v390 = vsel %vm385, %v370, %v374
  %v391 = vsel %vm385, %v372, %v376
  %v392 = vsel %vm385, %v382, %v370
  %v393 = vsel %vm385, %v384, %v372
  %v394 = vsel %vm220, 1, 0
  %v395 = vsel %vm221, 1, 0
  %v396 = vsel %vm222, 1, 0
  %v397 = vsel %vm223, 1, 0
  %v398 = vcvt.s32.f32 %v394
  %v399 = vcvt.s32.f32 %v395
  %v400 = vcvt.s32.f32 %v396
  %v401 = vcvt.s32.f32 %v397
  %v402 = vmul.f32 %v390, %v398
  %v403 = vmul.f32 %v388, %v399
  %v404 = vmul.f32 %v386, %v400
  %v405 = vmul.f32 %v392, %v401
  %v406 = vmul.f32 %v391, %v398
  %v407 = vmul.f32 %v389, %v399
  %v408 = vmul.f32 %v387, %v400
  %v409 = vmul.f32 %v393, %v401
  %v410 = vpack.c.bf16 %v406, %v402
  %v411 = vpack.c.bf16 %v407, %v403
  %v412 = vpack.c.bf16 %v408, %v404
  %v413 = vpack.c.bf16 %v409, %v405
  %v418 = vunpack.c.l.b16 %v410
  %v419 = vunpack.c.l.b16 %v411
  %v420 = vunpack.c.l.b16 %v412
  %v421 = vunpack.c.l.b16 %v413
  %v422 = vunpack.c.h.b16 %v410
  %v423 = vunpack.c.h.b16 %v411
  %v424 = vunpack.c.h.b16 %v412
  %v425 = vunpack.c.h.b16 %v413
  %v426 = vpack.c.b16 %v419, %v418
  %v427 = vpack.c.b16 %v421, %v420
  %v428 = vpack.c.b16 %v423, %v422
  %v429 = vpack.c.b16 %v425, %v424
  %434 = vst [vmem:[#allocation2 + $0xa0] sm:$0xff] %v426
  %435 = vst [vmem:[#allocation2 + $0xa8] sm:$0xff] %v427
  %436 = vst [vmem:[#allocation2 + $0xb0] sm:$0xff] %v428
  %437 = vst [vmem:[#allocation2 + $0xb8] sm:$0xff] %v429
  %438 = vrot.lane.b32.xlu0 %v35, 113
  %v439 = vpop.permute.xlu0 %438
  %440 = vrot.lane.b32.xlu0 %v40, 113
  %v441 = vpop.permute.xlu0 %440
  %442 = vrot.lane.b32.xlu0 %v36, 113
  %v443 = vpop.permute.xlu0 %442
  %444 = vrot.lane.b32.xlu0 %v41, 113
  %v445 = vpop.permute.xlu0 %444
  %446 = vrot.lane.b32.xlu0 %v38, 113
  %v447 = vpop.permute.xlu0 %446
  %448 = vrot.lane.b32.xlu0 %v43, 113
  %v449 = vpop.permute.xlu0 %448
  %450 = vrot.lane.b32.xlu0 %v39, 113
  %v451 = vpop.permute.xlu0 %450
  %452 = vrot.lane.b32.xlu0 %v44, 113
  %v453 = vpop.permute.xlu0 %452
  %vm454 = vcmp.lt.s32.totalorder %v19, 113
  %v455 = vsel %vm454, %v447, %v451
  %v456 = vsel %vm454, %v449, %v453
  %v457 = vsel %vm454, %v443, %v447
  %v458 = vsel %vm454, %v445, %v449
  %v459 = vsel %vm454, %v439, %v443
  %v460 = vsel %vm454, %v441, %v445
  %v461 = vsel %vm454, %v451, %v439
  %v462 = vsel %vm454, %v453, %v441
  %vm463 = vcmp.le.s32.totalorder %v31, 14
  %vm464 = vcmp.le.s32.totalorder %v32, 14
  %vm465 = vcmp.le.s32.totalorder %v33, 14
  %vm466 = vcmp.le.s32.totalorder %v34, 14
  %vm467 = vmand %vm463, %vm74
  %vm468 = vmand %vm464, %vm75
  %vm469 = vmand %vm465, %vm76
  %vm470 = vmand %vm466, %vm77
  %v471 = vsel %vm467, 1, 0
  %v472 = vsel %vm468, 1, 0
  %v473 = vsel %vm469, 1, 0
  %v474 = vsel %vm470, 1, 0
  %v475 = vcvt.s32.f32 %v471
  %v476 = vcvt.s32.f32 %v472
  %v477 = vcvt.s32.f32 %v473
  %v478 = vcvt.s32.f32 %v474
  %v479 = vmul.f32 %v459, %v475
  %v480 = vmul.f32 %v457, %v476
  %v481 = vmul.f32 %v455, %v477
  %v482 = vmul.f32 %v461, %v478
  %v483 = vmul.f32 %v460, %v475
  %v484 = vmul.f32 %v458, %v476
  %v485 = vmul.f32 %v456, %v477
  %v486 = vmul.f32 %v462, %v478
  %v487 = vpack.c.bf16 %v483, %v479
  %v488 = vpack.c.bf16 %v484, %v480
  %v489 = vpack.c.bf16 %v485, %v481
  %v490 = vpack.c.bf16 %v486, %v482
  %v495 = vunpack.c.l.b16 %v487
  %v496 = vunpack.c.l.b16 %v488
  %v497 = vunpack.c.l.b16 %v489
  %v498 = vunpack.c.l.b16 %v490
  %v499 = vunpack.c.h.b16 %v487
  %v500 = vunpack.c.h.b16 %v488
  %v501 = vunpack.c.h.b16 %v489
  %v502 = vunpack.c.h.b16 %v490
  %v503 = vpack.c.b16 %v496, %v495
  %v504 = vpack.c.b16 %v498, %v497
  %v505 = vpack.c.b16 %v500, %v499
  %v506 = vpack.c.b16 %v502, %v501
  %511 = vst [vmem:[#allocation2 + $0xc0] sm:$0xff] %v503
  %512 = vst [vmem:[#allocation2 + $0xc8] sm:$0xff] %v504
  %513 = vst [vmem:[#allocation2 + $0xd0] sm:$0xff] %v505
  %514 = vst [vmem:[#allocation2 + $0xd8] sm:$0xff] %v506
  %515 = vrot.lane.b32.xlu0 %v35, 112
  %v516 = vpop.permute.xlu0 %515
  %517 = vrot.lane.b32.xlu0 %v40, 112
  %v518 = vpop.permute.xlu0 %517
  %519 = vrot.lane.b32.xlu0 %v36, 112
  %v520 = vpop.permute.xlu0 %519
  %521 = vrot.lane.b32.xlu0 %v41, 112
  %v522 = vpop.permute.xlu0 %521
  %523 = vrot.lane.b32.xlu0 %v38, 112
  %v524 = vpop.permute.xlu0 %523
  %525 = vrot.lane.b32.xlu0 %v43, 112
  %v526 = vpop.permute.xlu0 %525
  %527 = vrot.lane.b32.xlu0 %v39, 112
  %v528 = vpop.permute.xlu0 %527
  %529 = vrot.lane.b32.xlu0 %v44, 112
  %v530 = vpop.permute.xlu0 %529
  %vm531 = vcmp.lt.s32.totalorder %v19, 112
  %v532 = vsel %vm531, %v524, %v528
  %v533 = vsel %vm531, %v526, %v530
  %v534 = vsel %vm531, %v520, %v524
  %v535 = vsel %vm531, %v522, %v526
  %v536 = vsel %vm531, %v516, %v520
  %v537 = vsel %vm531, %v518, %v522
  %v538 = vsel %vm531, %v528, %v516
  %v539 = vsel %vm531, %v530, %v518
  %v540 = vsel %vm463, 1, 0
  %v541 = vsel %vm464, 1, 0
  %v542 = vsel %vm465, 1, 0
  %v543 = vsel %vm466, 1, 0
  %v544 = vcvt.s32.f32 %v540
  %v545 = vcvt.s32.f32 %v541
  %v546 = vcvt.s32.f32 %v542
  %v547 = vcvt.s32.f32 %v543
  %v548 = vmul.f32 %v536, %v544
  %v549 = vmul.f32 %v534, %v545
  %v550 = vmul.f32 %v532, %v546
  %v551 = vmul.f32 %v538, %v547
  %v552 = vmul.f32 %v537, %v544
  %v553 = vmul.f32 %v535, %v545
  %v554 = vmul.f32 %v533, %v546
  %v555 = vmul.f32 %v539, %v547
  %v556 = vpack.c.bf16 %v552, %v548
  %v557 = vpack.c.bf16 %v553, %v549
  %v558 = vpack.c.bf16 %v554, %v550
  %v559 = vpack.c.bf16 %v555, %v551
  %v564 = vunpack.c.l.b16 %v556
  %v565 = vunpack.c.l.b16 %v557
  %v566 = vunpack.c.l.b16 %v558
  %v567 = vunpack.c.l.b16 %v559
  %v568 = vunpack.c.h.b16 %v556
  %v569 = vunpack.c.h.b16 %v557
  %v570 = vunpack.c.h.b16 %v558
  %v571 = vunpack.c.h.b16 %v559
  %v572 = vpack.c.b16 %v565, %v564
  %v573 = vpack.c.b16 %v567, %v566
  %v574 = vpack.c.b16 %v569, %v568
  %v575 = vpack.c.b16 %v571, %v570
  %580 = vst [vmem:[#allocation2 + $0xe0] sm:$0xff] %v572
  %581 = vst [vmem:[#allocation2 + $0xe8] sm:$0xff] %v573
  %582 = vst [vmem:[#allocation2 + $0xf0] sm:$0xff] %v574
  %583 = vst [vmem:[#allocation2 + $0xf8] sm:$0xff] %v575
  %584 = vrot.lane.b32.xlu0 %v35, 111
  %v585 = vpop.permute.xlu0 %584
  %586 = vrot.lane.b32.xlu0 %v40, 111
  %v587 = vpop.permute.xlu0 %586
  %588 = vrot.lane.b32.xlu0 %v36, 111
  %v589 = vpop.permute.xlu0 %588
  %590 = vrot.lane.b32.xlu0 %v41, 111
  %v591 = vpop.permute.xlu0 %590
  %592 = vrot.lane.b32.xlu0 %v38, 111
  %v593 = vpop.permute.xlu0 %592
  %594 = vrot.lane.b32.xlu0 %v43, 111
  %v595 = vpop.permute.xlu0 %594
  %596 = vrot.lane.b32.xlu0 %v39, 111
  %v597 = vpop.permute.xlu0 %596
  %598 = vrot.lane.b32.xlu0 %v44, 111
  %v599 = vpop.permute.xlu0 %598
  %vm600 = vcmp.lt.s32.totalorder %v19, 111
  %v601 = vsel %vm600, %v593, %v597
  %v602 = vsel %vm600, %v595, %v599
  %v603 = vsel %vm600, %v589, %v593
  %v604 = vsel %vm600, %v591, %v595
  %v605 = vsel %vm600, %v585, %v589
  %v606 = vsel %vm600, %v587, %v591
  %v607 = vsel %vm600, %v597, %v585
  %v608 = vsel %vm600, %v599, %v587
  %vm609 = vmand %vm463, %vm220
  %vm610 = vmand %vm464, %vm221
  %vm611 = vmand %vm465, %vm222
  %vm612 = vmand %vm466, %vm223
  %v613 = vsel %vm609, 1, 0
  %v614 = vsel %vm610, 1, 0
  %v615 = vsel %vm611, 1, 0
  %v616 = vsel %vm612, 1, 0
  %v617 = vcvt.s32.f32 %v613
  %v618 = vcvt.s32.f32 %v614
  %v619 = vcvt.s32.f32 %v615
  %v620 = vcvt.s32.f32 %v616
  %v621 = vmul.f32 %v605, %v617
  %v622 = vmul.f32 %v603, %v618
  %v623 = vmul.f32 %v601, %v619
  %v624 = vmul.f32 %v607, %v620
  %v625 = vmul.f32 %v606, %v617
  %v626 = vmul.f32 %v604, %v618
  %v627 = vmul.f32 %v602, %v619
  %v628 = vmul.f32 %v608, %v620
  %v629 = vpack.c.bf16 %v625, %v621
  %v630 = vpack.c.bf16 %v626, %v622
  %v631 = vpack.c.bf16 %v627, %v623
  %v632 = vpack.c.bf16 %v628, %v624
  %v637 = vunpack.c.l.b16 %v629
  %v638 = vunpack.c.l.b16 %v630
  %v639 = vunpack.c.l.b16 %v631
  %v640 = vunpack.c.l.b16 %v632
  %v641 = vunpack.c.h.b16 %v629
  %v642 = vunpack.c.h.b16 %v630
  %v643 = vunpack.c.h.b16 %v631
  %v644 = vunpack.c.h.b16 %v632
  %v645 = vpack.c.b16 %v638, %v637
  %v646 = vpack.c.b16 %v640, %v639
  %v647 = vpack.c.b16 %v642, %v641
  %v648 = vpack.c.b16 %v644, %v643
  %653 = vst [vmem:[#allocation2 + $0x100] sm:$0xff] %v645
  %654 = vst [vmem:[#allocation2 + $0x108] sm:$0xff] %v646
  %655 = vst [vmem:[#allocation2 + $0x110] sm:$0xff] %v647
  %656 = vst [vmem:[#allocation2 + $0x118] sm:$0xff] %v648
  %v657 = vlaneseq
  %v658 = vshrl.u32 %v657, 7
  %v659 = vadd.s32 %v658, 8
  %vm660 = vcmp.eq.s32.totalorder %v658, 0
  %vm661 = vcmp.eq.s32.totalorder %v659, 0
  %v662 = vsel %vm660, 1, 0
  %v663 = vsel %vm661, 1, 0
  %v664 = vcvt.s32.f32 %v662
  %v665 = vcvt.s32.f32 %v663
  %v666 = vpack.c.bf16 %v665, %v664
  %v669 = vunpack.c.l.s4 839922192
  %v670 = vunpack.c.0.s8 %v669
  %v671 = vlaneseq
  %v672 = vshrl.u32 %v671, 7
  %v673 = vsub.s32 %v670, %v672
  %v674 = vrot.slane %v666, %v673
  %v676 = vunpack.c.l.s4 1985246804
  %v677 = vunpack.c.0.s8 %v676
  %v678 = vlaneseq
  %v679 = vshrl.u32 %v678, 7
  %v680 = vsub.s32 %v677, %v679
  %v681 = vrot.slane %v666, %v680
  %684 = vst [vmem:[#allocation2 + $0x120] sm:$0xff] %v674
  %685 = vst [vmem:[#allocation2 + $0x128] sm:$0xff] %v674
  %686 = vst [vmem:[#allocation2 + $0x130] sm:$0xff] %v681
  %687 = vst [vmem:[#allocation2 + $0x138] sm:$0xff] %v681
  %v688 = vld [vmem:[%s2] sm:$0xff]
  %v689 = vld [vmem:[%s2 + $0x8] sm:$0xff]
  %v690 = vld [vmem:[%s2 + $0x10] sm:$0xff]
  %v691 = vld [vmem:[#allocation2] sm:$0xff]
  %v692 = vld [vmem:[#allocation2 + $0x8] sm:$0xff]
  %v693 = vld [vmem:[#allocation2 + $0x10] sm:$0xff]
  %v694 = vld [vmem:[#allocation2 + $0x18] sm:$0xff]
  %v695 = vld [vmem:[#allocation2 + $0x20] sm:$0xff]
  %v696 = vld [vmem:[#allocation2 + $0x28] sm:$0xff]
  %v697 = vld [vmem:[#allocation2 + $0x30] sm:$0xff]
  %v698 = vld [vmem:[#allocation2 + $0x38] sm:$0xff]
  %v699 = vld [vmem:[#allocation2 + $0x40] sm:$0xff]
  %v700 = vld [vmem:[#allocation2 + $0x48] sm:$0xff]
  %v701 = vld [vmem:[#allocation2 + $0x50] sm:$0xff]
  %v702 = vld [vmem:[#allocation2 + $0x58] sm:$0xff]
  %v703 = vld [vmem:[#allocation2 + $0x60] sm:$0xff]
  %v704 = vld [vmem:[#allocation2 + $0x68] sm:$0xff]
  %v705 = vld [vmem:[#allocation2 + $0x70] sm:$0xff]
  %v706 = vld [vmem:[#allocation2 + $0x78] sm:$0xff]
  %v707 = vld [vmem:[#allocation2 + $0x80] sm:$0xff]
  %v708 = vld [vmem:[#allocation2 + $0x88] sm:$0xff]
  %v709 = vld [vmem:[#allocation2 + $0x90] sm:$0xff]
  %v710 = vld [vmem:[#allocation2 + $0x98] sm:$0xff]
  %v711 = vld [vmem:[#allocation2 + $0xa0] sm:$0xff]
  %v712 = vld [vmem:[#allocation2 + $0xa8] sm:$0xff]
  %v713 = vld [vmem:[#allocation2 + $0xb0] sm:$0xff]
  %v714 = vld [vmem:[#allocation2 + $0xb8] sm:$0xff]
  %v715 = vld [vmem:[#allocation2 + $0xc0] sm:$0xff]
  %v716 = vld [vmem:[#allocation2 + $0xc8] sm:$0xff]
  %v717 = vld [vmem:[#allocation2 + $0xd0] sm:$0xff]
  %v718 = vld [vmem:[#allocation2 + $0xd8] sm:$0xff]
  %v719 = vld [vmem:[#allocation2 + $0xe0] sm:$0xff]
  %v720 = vld [vmem:[#allocation2 + $0xe8] sm:$0xff]
  %v721 = vld [vmem:[#allocation2 + $0xf0] sm:$0xff]
  %v722 = vld [vmem:[#allocation2 + $0xf8] sm:$0xff]
  %v723 = vld [vmem:[#allocation2 + $0x100] sm:$0xff]
  %v724 = vld [vmem:[#allocation2 + $0x108] sm:$0xff]
  %v725 = vld [vmem:[#allocation2 + $0x110] sm:$0xff]
  %v726 = vld [vmem:[#allocation2 + $0x118] sm:$0xff]
  %v727 = vld [vmem:[#allocation2 + $0x120] sm:$0xff]
  %v728 = vld [vmem:[#allocation2 + $0x128] sm:$0xff]
  %v729 = vld [vmem:[#allocation2 + $0x130] sm:$0xff]
  %v730 = vld [vmem:[#allocation2 + $0x138] sm:$0xff]
  %v734 = vunpack.c.l.b16 %v688
  %v735 = vunpack.c.h.b16 %v688
  %v736 = vunpack.c.l.b16 %v689
  %v737 = vunpack.c.h.b16 %v689
  %v738 = vunpack.c.l.b16 %v690
  %v739 = vunpack.c.h.b16 %v690
  %v740 = vpack.c.b16 %v736, %v734
  %v741 = vpack.c.b16 %v737, %v735
  %v742 = vpack.c.b16 %v738, %v738
  %v743 = vpack.c.b16 %v739, %v739
  %v786 = vunpack.c.l.b16 %v691
  %v787 = vunpack.c.h.b16 %v691
  %v788 = vunpack.c.l.b16 %v692
  %v789 = vunpack.c.h.b16 %v692
  %v790 = vunpack.c.l.b16 %v693
  %v791 = vunpack.c.h.b16 %v693
  %v792 = vunpack.c.l.b16 %v694
  %v793 = vunpack.c.h.b16 %v694
  %v794 = vunpack.c.l.b16 %v695
  %v795 = vunpack.c.h.b16 %v695
  %v796 = vunpack.c.l.b16 %v696
  %v797 = vunpack.c.h.b16 %v696
  %v798 = vunpack.c.l.b16 %v697
  %v799 = vunpack.c.h.b16 %v697
  %v800 = vunpack.c.l.b16 %v698
  %v801 = vunpack.c.h.b16 %v698
  %v802 = vunpack.c.l.b16 %v699
  %v803 = vunpack.c.h.b16 %v699
  %v804 = vunpack.c.l.b16 %v700
  %v805 = vunpack.c.h.b16 %v700
  %v806 = vunpack.c.l.b16 %v701
  %v807 = vunpack.c.h.b16 %v701
  %v808 = vunpack.c.l.b16 %v702
  %v809 = vunpack.c.h.b16 %v702
  %v810 = vunpack.c.l.b16 %v703
  %v811 = vunpack.c.h.b16 %v703
  %v812 = vunpack.c.l.b16 %v704
  %v813 = vunpack.c.h.b16 %v704
  %v814 = vunpack.c.l.b16 %v705
  %v815 = vunpack.c.h.b16 %v705
  %v816 = vunpack.c.l.b16 %v706
  %v817 = vunpack.c.h.b16 %v706
  %v818 = vunpack.c.l.b16 %v707
  %v819 = vunpack.c.h.b16 %v707
  %v820 = vunpack.c.l.b16 %v708
  %v821 = vunpack.c.h.b16 %v708
  %v822 = vunpack.c.l.b16 %v709
  %v823 = vunpack.c.h.b16 %v709
  %v824 = vunpack.c.l.b16 %v710
  %v825 = vunpack.c.h.b16 %v710
  %v826 = vunpack.c.l.b16 %v711
  %v827 = vunpack.c.h.b16 %v711
  %v828 = vunpack.c.l.b16 %v712
  %v829 = vunpack.c.h.b16 %v712
  %v830 = vunpack.c.l.b16 %v713
  %v831 = vunpack.c.h.b16 %v713
  %v832 = vunpack.c.l.b16 %v714
  %v833 = vunpack.c.h.b16 %v714
  %v834 = vunpack.c.l.b16 %v715
  %v835 = vunpack.c.h.b16 %v715
  %v836 = vunpack.c.l.b16 %v716
  %v837 = vunpack.c.h.b16 %v716
  %v838 = vunpack.c.l.b16 %v717
  %v839 = vunpack.c.h.b16 %v717
  %v840 = vunpack.c.l.b16 %v718
  %v841 = vunpack.c.h.b16 %v718
  %v842 = vunpack.c.l.b16 %v719
  %v843 = vunpack.c.h.b16 %v719
  %v844 = vunpack.c.l.b16 %v720
  %v845 = vunpack.c.h.b16 %v720
  %v846 = vunpack.c.l.b16 %v721
  %v847 = vunpack.c.h.b16 %v721
  %v848 = vunpack.c.l.b16 %v722
  %v849 = vunpack.c.h.b16 %v722
  %v850 = vunpack.c.l.b16 %v723
  %v851 = vunpack.c.h.b16 %v723
  %v852 = vunpack.c.l.b16 %v724
  %v853 = vunpack.c.h.b16 %v724
  %v854 = vunpack.c.l.b16 %v725
  %v855 = vunpack.c.h.b16 %v725
  %v856 = vunpack.c.l.b16 %v726
  %v857 = vunpack.c.h.b16 %v726
  %v858 = vunpack.c.l.b16 %v727
  %v859 = vunpack.c.h.b16 %v727
  %v860 = vunpack.c.l.b16 %v728
  %v861 = vunpack.c.h.b16 %v728
  %v862 = vunpack.c.l.b16 %v729
  %v863 = vunpack.c.h.b16 %v729
  %v864 = vunpack.c.l.b16 %v730
  %v865 = vunpack.c.h.b16 %v730
  %v866 = vpack.c.b16 %v790, %v786
  %v867 = vpack.c.b16 %v791, %v787
  %v868 = vpack.c.b16 %v792, %v788
  %v869 = vpack.c.b16 %v793, %v789
  %v870 = vpack.c.b16 %v798, %v794
  %v871 = vpack.c.b16 %v799, %v795
  %v872 = vpack.c.b16 %v800, %v796
  %v873 = vpack.c.b16 %v801, %v797
  %v874 = vpack.c.b16 %v806, %v802
  %v875 = vpack.c.b16 %v807, %v803
  %v876 = vpack.c.b16 %v808, %v804
  %v877 = vpack.c.b16 %v809, %v805
  %v878 = vpack.c.b16 %v814, %v810
  %v879 = vpack.c.b16 %v815, %v811
  %v880 = vpack.c.b16 %v816, %v812
  %v881 = vpack.c.b16 %v817, %v813
  %v882 = vpack.c.b16 %v822, %v818
  %v883 = vpack.c.b16 %v823, %v819
  %v884 = vpack.c.b16 %v824, %v820
  %v885 = vpack.c.b16 %v825, %v821
  %v886 = vpack.c.b16 %v830, %v826
  %v887 = vpack.c.b16 %v831, %v827
  %v888 = vpack.c.b16 %v832, %v828
  %v889 = vpack.c.b16 %v833, %v829
  %v890 = vpack.c.b16 %v838, %v834
  %v891 = vpack.c.b16 %v839, %v835
  %v892 = vpack.c.b16 %v840, %v836
  %v893 = vpack.c.b16 %v841, %v837
  %v894 = vpack.c.b16 %v846, %v842
  %v895 = vpack.c.b16 %v847, %v843
  %v896 = vpack.c.b16 %v848, %v844
  %v897 = vpack.c.b16 %v849, %v845
  %v898 = vpack.c.b16 %v854, %v850
  %v899 = vpack.c.b16 %v855, %v851
  %v900 = vpack.c.b16 %v856, %v852
  %v901 = vpack.c.b16 %v857, %v853
  %v902 = vpack.c.b16 %v862, %v858
  %v903 = vpack.c.b16 %v863, %v859
  %v904 = vpack.c.b16 %v864, %v860
  %v905 = vpack.c.b16 %v865, %v861
  %vm946 = vcmask 261120
  %v948 = vsel %vm946, %v741, 0
  %v951 = vsel %vm946, %v743, 0
  %953 = vmatprep.subr.bf16.mxu0 %v895
  %954 = vmatpush1.bf16.msra.mxu0 %v894
  %955 = vmatprep.subr.bf16.mxu0 %v891
  %956 = vmatpush1.bf16.msra.mxu0 %v890
  %957 = vmatprep.subr.bf16.mxu0 %v887
  %958 = vmatpush1.bf16.msra.mxu0 %v886
  %959 = vmatprep.subr.bf16.mxu0 %v883
  %960 = vmatpush1.bf16.msra.mxu0 %v882
  %961 = vmatprep.subr.bf16.mxu0 %v879
  %962 = vmatpush1.bf16.msra.mxu0 %v878
  %963 = vmatprep.subr.bf16.mxu0 %v875
  %964 = vmatpush1.bf16.msra.mxu0 %v874
  %965 = vmatprep.subr.bf16.mxu0 %v871
  %966 = vmatpush1.bf16.msra.mxu0 %v870
  %967 = vmatprep.subr.bf16.mxu0 %v867
  %968 = vmatpush1.bf16.msra.mxu0 %v866
  %969 = vmatprep.subr.bf16.mxu0 0
  %970 = vmatpush2.bf16.msra.mxu0 0
  %971 = vmatprep.subr.bf16.mxu0 0
  %972 = vmatpush2.bf16.msra.mxu0 0
  %973 = vmatprep.subr.bf16.mxu0 0
  %974 = vmatpush2.bf16.msra.mxu0 0
  %975 = vmatprep.subr.bf16.mxu0 0
  %976 = vmatpush2.bf16.msra.mxu0 0
  %977 = vmatprep.subr.bf16.mxu0 0
  %978 = vmatpush2.bf16.msra.mxu0 0
  %979 = vmatprep.subr.bf16.mxu0 0
  %980 = vmatpush2.bf16.msra.mxu0 0
  %981 = vmatprep.subr.bf16.mxu0 %v903
  %982 = vmatpush2.bf16.msra.mxu0 %v902
  %983 = vmatprep.subr.bf16.mxu0 %v899
  %984 = vmatpush2.bf16.msra.mxu0 %v898
  %985 = vmatprep.mubr.bf16.mxu0 %v948
  %986 = vmatmul.mubr.bf16.gmra.mxu0 %v740
  %v987 = vpop.f32.mrf.mxu0
  %v988 = vadd.f32 0.0, %v987
  %v989 = vpop.f32.mrf.mxu0
  %v990 = vadd.f32 0.0, %v989
  %v991 = vpop.f32.mrf.mxu0
  %v992 = vadd.f32 0.0, %v991
  %v993 = vpop.f32.mrf.mxu0
  %v994 = vadd.f32 0.0, %v993
  %995 = vmatprep.mubr.bf16.mxu0 %v951
  %996 = vmatmul.mubr.bf16.gmra.mxu0 %v742
  %v997 = vpop.f32.mrf.mxu0
  %v998 = vadd.f32 0.0, %v997
  %v999 = vpop.f32.mrf.mxu0
  %v1000 = vadd.f32 0.0, %v999
  %v1001 = vpop.f32.mrf.mxu0
  %v1002 = vpop.f32.mrf.mxu0
  %1003 = vdwg.mxu0
  %1004 = vmatprep.subr.bf16.mxu0 %v897
  %1005 = vmatpush1.bf16.msra.mxu0 %v896
  %1006 = vmatprep.subr.bf16.mxu0 %v893
  %1007 = vmatpush1.bf16.msra.mxu0 %v892
  %1008 = vmatprep.subr.bf16.mxu0 %v889
  %1009 = vmatpush1.bf16.msra.mxu0 %v888
  %1010 = vmatprep.subr.bf16.mxu0 %v885
  %1011 = vmatpush1.bf16.msra.mxu0 %v884
  %1012 = vmatprep.subr.bf16.mxu0 %v881
  %1013 = vmatpush1.bf16.msra.mxu0 %v880
  %1014 = vmatprep.subr.bf16.mxu0 %v877
  %1015 = vmatpush1.bf16.msra.mxu0 %v876
  %1016 = vmatprep.subr.bf16.mxu0 %v873
  %1017 = vmatpush1.bf16.msra.mxu0 %v872
  %1018 = vmatprep.subr.bf16.mxu0 %v869
  %1019 = vmatpush1.bf16.msra.mxu0 %v868
  %1020 = vmatprep.subr.bf16.mxu0 0
  %1021 = vmatpush2.bf16.msra.mxu0 0
  %1022 = vmatprep.subr.bf16.mxu0 0
  %1023 = vmatpush2.bf16.msra.mxu0 0
  %1024 = vmatprep.subr.bf16.mxu0 0
  %1025 = vmatpush2.bf16.msra.mxu0 0
  %1026 = vmatprep.subr.bf16.mxu0 0
  %1027 = vmatpush2.bf16.msra.mxu0 0
  %1028 = vmatprep.subr.bf16.mxu0 0
  %1029 = vmatpush2.bf16.msra.mxu0 0
  %1030 = vmatprep.subr.bf16.mxu0 0
  %1031 = vmatpush2.bf16.msra.mxu0 0
  %1032 = vmatprep.subr.bf16.mxu0 %v905
  %1033 = vmatpush2.bf16.msra.mxu0 %v904
  %1034 = vmatprep.subr.bf16.mxu0 %v901
  %1035 = vmatpush2.bf16.msra.mxu0 %v900
  %1036 = vmatprep.mubr.bf16.mxu0 %v948
  %1037 = vmatmul.mubr.bf16.gmra.mxu0 %v740
  %v1038 = vpop.f32.mrf.mxu0
  %v1039 = vadd.f32 0.0, %v1038
  %v1040 = vpop.f32.mrf.mxu0
  %v1041 = vadd.f32 0.0, %v1040
  %v1042 = vpop.f32.mrf.mxu0
  %v1043 = vadd.f32 0.0, %v1042
  %v1044 = vpop.f32.mrf.mxu0
  %v1045 = vadd.f32 0.0, %v1044
  %1046 = vmatprep.mubr.bf16.mxu0 %v951
  %1047 = vmatmul.mubr.bf16.gmra.mxu0 %v742
  %v1048 = vpop.f32.mrf.mxu0
  %v1049 = vadd.f32 0.0, %v1048
  %v1050 = vpop.f32.mrf.mxu0
  %v1051 = vadd.f32 0.0, %v1050
  %v1052 = vpop.f32.mrf.mxu0
  %v1053 = vpop.f32.mrf.mxu0
  %1054 = vdwg.mxu0
  %v1055 = vxor.u32 %v988, 2147483648
  %v1056 = vxor.u32 %v990, 2147483648
  %v1057 = vxor.u32 %v1039, 2147483648
  %v1058 = vxor.u32 %v1041, 2147483648
  %v1059 = vmul.f32 %v1055, 1.442695
  %v1060 = vpow.pop %v1059
  %v1061 = vmul.f32 %v1056, 1.442695
  %v1062 = vpow.pop %v1061
  %v1063 = vmul.f32 %v1057, 1.442695
  %v1064 = vpow.pop %v1063
  %v1065 = vmul.f32 %v1058, 1.442695
  %v1066 = vpow.pop %v1065
  %v1067 = vadd.f32 %v1060, 1.0
  %v1068 = vadd.f32 %v1062, 1.0
  %v1069 = vadd.f32 %v1064, 1.0
  %v1070 = vadd.f32 %v1066, 1.0
  %v1071 = vrcp.pop %v1067
  %v1072 = vmul.f32 1.0, %v1071
  %v1073 = vrcp.pop %v1068
  %v1074 = vmul.f32 1.0, %v1073
  %v1075 = vrcp.pop %v1069
  %v1076 = vmul.f32 1.0, %v1075
  %v1077 = vrcp.pop %v1070
  %v1078 = vmul.f32 1.0, %v1077
  %v1079 = vxor.u32 %v992, 2147483648
  %v1080 = vxor.u32 %v994, 2147483648
  %v1081 = vxor.u32 %v1043, 2147483648
  %v1082 = vxor.u32 %v1045, 2147483648
  %v1083 = vmul.f32 %v1079, 1.442695
  %v1084 = vpow.pop %v1083
  %v1085 = vmul.f32 %v1080, 1.442695
  %v1086 = vpow.pop %v1085
  %v1087 = vmul.f32 %v1081, 1.442695
  %v1088 = vpow.pop %v1087
  %v1089 = vmul.f32 %v1082, 1.442695
  %v1090 = vpow.pop %v1089
  %v1091 = vadd.f32 %v1084, 1.0
  %v1092 = vadd.f32 %v1086, 1.0
  %v1093 = vadd.f32 %v1088, 1.0
  %v1094 = vadd.f32 %v1090, 1.0
  %v1095 = vrcp.pop %v1091
  %v1096 = vmul.f32 1.0, %v1095
  %v1097 = vrcp.pop %v1092
  %v1098 = vmul.f32 1.0, %v1097
  %v1099 = vrcp.pop %v1093
  %v1100 = vmul.f32 1.0, %v1099
  %v1101 = vrcp.pop %v1094
  %v1102 = vmul.f32 1.0, %v1101
  %v1103 = vmul.f32 %v1096, %v40
  %v1104 = vmul.f32 %v1098, %v41
  %v1105 = vmul.f32 %v1100, %v43
  %v1106 = vmul.f32 %v1102, %v44
  %1107 = vrot.lane.b32.xlu0 %v1103, 17
  %v1108 = vpop.permute.xlu0 %1107
  %1109 = vrot.lane.b32.xlu0 %v1104, 17
  %v1110 = vpop.permute.xlu0 %1109
  %1111 = vrot.lane.b32.xlu0 %v1105, 17
  %v1112 = vpop.permute.xlu0 %1111
  %1113 = vrot.lane.b32.xlu0 %v1106, 17
  %v1114 = vpop.permute.xlu0 %1113
  %v1115 = vsel %vm61, %v1112, %v1114
  %v1116 = vsel %vm61, %v1110, %v1112
  %v1117 = vsel %vm61, %v1108, %v1110
  %v1118 = vsel %vm61, %v1114, %v1108
  %v1119 = vmul.f32 %v1118, %v86
  %v1120 = vmul.f32 %v1117, %v87
  %v1121 = vmul.f32 %v1116, %v88
  %v1122 = vmul.f32 %v1115, %v89
  %1123 = vst [vmem:[#allocation3] sm:$0xff] %v1119
  %1124 = vst [vmem:[#allocation3 + $0x8] sm:$0xff] %v1120
  %1125 = vst [vmem:[#allocation3 + $0x10] sm:$0xff] %v1121
  %1126 = vst [vmem:[#allocation3 + $0x18] sm:$0xff] %v1122
  %1127 = vrot.lane.b32.xlu0 %v1103, 16
  %v1128 = vpop.permute.xlu0 %1127
  %1129 = vrot.lane.b32.xlu0 %v1104, 16
  %v1130 = vpop.permute.xlu0 %1129
  %1131 = vrot.lane.b32.xlu0 %v1105, 16
  %v1132 = vpop.permute.xlu0 %1131
  %1133 = vrot.lane.b32.xlu0 %v1106, 16
  %v1134 = vpop.permute.xlu0 %1133
  %v1135 = vsel %vm142, %v1132, %v1134
  %v1136 = vsel %vm142, %v1130, %v1132
  %v1137 = vsel %vm142, %v1128, %v1130
  %v1138 = vsel %vm142, %v1134, %v1128
  %v1139 = vmul.f32 %v1138, %v155
  %v1140 = vmul.f32 %v1137, %v156
  %v1141 = vmul.f32 %v1136, %v157
  %v1142 = vmul.f32 %v1135, %v158
  %1143 = vst [vmem:[#allocation3 + $0x20] sm:$0xff] %v1139
  %1144 = vst [vmem:[#allocation3 + $0x28] sm:$0xff] %v1140
  %1145 = vst [vmem:[#allocation3 + $0x30] sm:$0xff] %v1141
  %1146 = vst [vmem:[#allocation3 + $0x38] sm:$0xff] %v1142
  %1147 = vrot.lane.b32.xlu0 %v1103, 15
  %v1148 = vpop.permute.xlu0 %1147
  %1149 = vrot.lane.b32.xlu0 %v1104, 15
  %v1150 = vpop.permute.xlu0 %1149
  %1151 = vrot.lane.b32.xlu0 %v1105, 15
  %v1152 = vpop.permute.xlu0 %1151
  %1153 = vrot.lane.b32.xlu0 %v1106, 15
  %v1154 = vpop.permute.xlu0 %1153
  %v1155 = vsel %vm211, %v1152, %v1154
  %v1156 = vsel %vm211, %v1150, %v1152
  %v1157 = vsel %vm211, %v1148, %v1150
  %v1158 = vsel %vm211, %v1154, %v1148
  %v1159 = vmul.f32 %v1158, %v232
  %v1160 = vmul.f32 %v1157, %v233
  %v1161 = vmul.f32 %v1156, %v234
  %v1162 = vmul.f32 %v1155, %v235
  %1163 = vst [vmem:[#allocation3 + $0x40] sm:$0xff] %v1159
  %1164 = vst [vmem:[#allocation3 + $0x48] sm:$0xff] %v1160
  %1165 = vst [vmem:[#allocation3 + $0x50] sm:$0xff] %v1161
  %1166 = vst [vmem:[#allocation3 + $0x58] sm:$0xff] %v1162
  %1167 = vrot.lane.b32.xlu0 %v1103, 1
  %v1168 = vpop.permute.xlu0 %1167
  %1169 = vrot.lane.b32.xlu0 %v1104, 1
  %v1170 = vpop.permute.xlu0 %1169
  %1171 = vrot.lane.b32.xlu0 %v1105, 1
  %v1172 = vpop.permute.xlu0 %1171
  %1173 = vrot.lane.b32.xlu0 %v1106, 1
  %v1174 = vpop.permute.xlu0 %1173
  %v1175 = vsel %vm288, %v1172, %v1174
  %v1176 = vsel %vm288, %v1170, %v1172
  %v1177 = vsel %vm288, %v1168, %v1170
  %v1178 = vsel %vm288, %v1174, %v1168
  %v1179 = vmul.f32 %v1178, %v301
  %v1180 = vmul.f32 %v1177, %v302
  %v1181 = vmul.f32 %v1176, %v303
  %v1182 = vmul.f32 %v1175, %v304
  %1183 = vst [vmem:[#allocation3 + $0x60] sm:$0xff] %v1179
  %1184 = vst [vmem:[#allocation3 + $0x68] sm:$0xff] %v1180
  %1185 = vst [vmem:[#allocation3 + $0x70] sm:$0xff] %v1181
  %1186 = vst [vmem:[#allocation3 + $0x78] sm:$0xff] %v1182
  %1187 = vst [vmem:[#allocation3 + $0x80] sm:$0xff] %v1103
  %1188 = vst [vmem:[#allocation3 + $0x88] sm:$0xff] %v1104
  %1189 = vst [vmem:[#allocation3 + $0x90] sm:$0xff] %v1105
  %1190 = vst [vmem:[#allocation3 + $0x98] sm:$0xff] %v1106
  %1191 = vrot.lane.b32.xlu0 %v1103, 127
  %v1192 = vpop.permute.xlu0 %1191
  %1193 = vrot.lane.b32.xlu0 %v1104, 127
  %v1194 = vpop.permute.xlu0 %1193
  %1195 = vrot.lane.b32.xlu0 %v1105, 127
  %v1196 = vpop.permute.xlu0 %1195
  %1197 = vrot.lane.b32.xlu0 %v1106, 127
  %v1198 = vpop.permute.xlu0 %1197
  %v1199 = vsel %vm385, %v1196, %v1198
  %v1200 = vsel %vm385, %v1194, %v1196
  %v1201 = vsel %vm385, %v1192, %v1194
  %v1202 = vsel %vm385, %v1198, %v1192
  %v1203 = vmul.f32 %v1201, %v398
  %v1204 = vmul.f32 %v1200, %v399
  %v1205 = vmul.f32 %v1199, %v400
  %v1206 = vmul.f32 %v1202, %v401
  %1207 = vst [vmem:[#allocation3 + $0xa0] sm:$0xff] %v1203
  %1208 = vst [vmem:[#allocation3 + $0xa8] sm:$0xff] %v1204
  %1209 = vst [vmem:[#allocation3 + $0xb0] sm:$0xff] %v1205
  %1210 = vst [vmem:[#allocation3 + $0xb8] sm:$0xff] %v1206
  %1211 = vrot.lane.b32.xlu0 %v1103, 113
  %v1212 = vpop.permute.xlu0 %1211
  %1213 = vrot.lane.b32.xlu0 %v1104, 113
  %v1214 = vpop.permute.xlu0 %1213
  %1215 = vrot.lane.b32.xlu0 %v1105, 113
  %v1216 = vpop.permute.xlu0 %1215
  %1217 = vrot.lane.b32.xlu0 %v1106, 113
  %v1218 = vpop.permute.xlu0 %1217
  %v1219 = vsel %vm454, %v1216, %v1218
  %v1220 = vsel %vm454, %v1214, %v1216
  %v1221 = vsel %vm454, %v1212, %v1214
  %v1222 = vsel %vm454, %v1218, %v1212
  %v1223 = vmul.f32 %v1221, %v475
  %v1224 = vmul.f32 %v1220, %v476
  %v1225 = vmul.f32 %v1219, %v477
  %v1226 = vmul.f32 %v1222, %v478
  %1227 = vst [vmem:[#allocation3 + $0xc0] sm:$0xff] %v1223
  %1228 = vst [vmem:[#allocation3 + $0xc8] sm:$0xff] %v1224
  %1229 = vst [vmem:[#allocation3 + $0xd0] sm:$0xff] %v1225
  %1230 = vst [vmem:[#allocation3 + $0xd8] sm:$0xff] %v1226
  %1231 = vrot.lane.b32.xlu0 %v1103, 112
  %v1232 = vpop.permute.xlu0 %1231
  %1233 = vrot.lane.b32.xlu0 %v1104, 112
  %v1234 = vpop.permute.xlu0 %1233
  %1235 = vrot.lane.b32.xlu0 %v1105, 112
  %v1236 = vpop.permute.xlu0 %1235
  %1237 = vrot.lane.b32.xlu0 %v1106, 112
  %v1238 = vpop.permute.xlu0 %1237
  %v1239 = vsel %vm531, %v1236, %v1238
  %v1240 = vsel %vm531, %v1234, %v1236
  %v1241 = vsel %vm531, %v1232, %v1234
  %v1242 = vsel %vm531, %v1238, %v1232
  %v1243 = vmul.f32 %v1241, %v544
  %v1244 = vmul.f32 %v1240, %v545
  %v1245 = vmul.f32 %v1239, %v546
  %v1246 = vmul.f32 %v1242, %v547
  %1247 = vst [vmem:[#allocation3 + $0xe0] sm:$0xff] %v1243
  %1248 = vst [vmem:[#allocation3 + $0xe8] sm:$0xff] %v1244
  %1249 = vst [vmem:[#allocation3 + $0xf0] sm:$0xff] %v1245
  %1250 = vst [vmem:[#allocation3 + $0xf8] sm:$0xff] %v1246
  %1251 = vrot.lane.b32.xlu0 %v1103, 111
  %v1252 = vpop.permute.xlu0 %1251
  %1253 = vrot.lane.b32.xlu0 %v1104, 111
  %v1254 = vpop.permute.xlu0 %1253
  %1255 = vrot.lane.b32.xlu0 %v1105, 111
  %v1256 = vpop.permute.xlu0 %1255
  %1257 = vrot.lane.b32.xlu0 %v1106, 111
  %v1258 = vpop.permute.xlu0 %1257
  %v1259 = vsel %vm600, %v1256, %v1258
  %v1260 = vsel %vm600, %v1254, %v1256
  %v1261 = vsel %vm600, %v1252, %v1254
  %v1262 = vsel %vm600, %v1258, %v1252
  %v1263 = vmul.f32 %v1261, %v617
  %v1264 = vmul.f32 %v1260, %v618
  %v1265 = vmul.f32 %v1259, %v619
  %v1266 = vmul.f32 %v1262, %v620
  %1267 = vst [vmem:[#allocation3 + $0x100] sm:$0xff] %v1263
  %1268 = vst [vmem:[#allocation3 + $0x108] sm:$0xff] %v1264
  %1269 = vst [vmem:[#allocation3 + $0x110] sm:$0xff] %v1265
  %1270 = vst [vmem:[#allocation3 + $0x118] sm:$0xff] %v1266
  %v1271 = vld [vmem:[%s3] sm:$0xf]
  %v1272 = vld [vmem:[#allocation3] sm:$0xff]
  %v1273 = vld [vmem:[#allocation3 + $0x8] sm:$0xff]
  %v1274 = vld [vmem:[#allocation3 + $0x10] sm:$0xff]
  %v1275 = vld [vmem:[#allocation3 + $0x18] sm:$0xff]
  %v1276 = vld [vmem:[#allocation3 + $0x20] sm:$0xff]
  %v1277 = vld [vmem:[#allocation3 + $0x28] sm:$0xff]
  %v1278 = vld [vmem:[#allocation3 + $0x30] sm:$0xff]
  %v1279 = vld [vmem:[#allocation3 + $0x38] sm:$0xff]
  %v1280 = vld [vmem:[#allocation3 + $0x40] sm:$0xff]
  %v1281 = vld [vmem:[#allocation3 + $0x48] sm:$0xff]
  %v1282 = vld [vmem:[#allocation3 + $0x50] sm:$0xff]
  %v1283 = vld [vmem:[#allocation3 + $0x58] sm:$0xff]
  %v1284 = vld [vmem:[#allocation3 + $0x60] sm:$0xff]
  %v1285 = vld [vmem:[#allocation3 + $0x68] sm:$0xff]
  %v1286 = vld [vmem:[#allocation3 + $0x70] sm:$0xff]
  %v1287 = vld [vmem:[#allocation3 + $0x78] sm:$0xff]
  %v1288 = vld [vmem:[#allocation3 + $0x80] sm:$0xff]
  %v1289 = vld [vmem:[#allocation3 + $0x88] sm:$0xff]
  %v1290 = vld [vmem:[#allocation3 + $0x90] sm:$0xff]
  %v1291 = vld [vmem:[#allocation3 + $0x98] sm:$0xff]
  %v1292 = vld [vmem:[#allocation3 + $0xa0] sm:$0xff]
  %v1293 = vld [vmem:[#allocation3 + $0xa8] sm:$0xff]
  %v1294 = vld [vmem:[#allocation3 + $0xb0] sm:$0xff]
  %v1295 = vld [vmem:[#allocation3 + $0xb8] sm:$0xff]
  %v1296 = vld [vmem:[#allocation3 + $0xc0] sm:$0xff]
  %v1297 = vld [vmem:[#allocation3 + $0xc8] sm:$0xff]
  %v1298 = vld [vmem:[#allocation3 + $0xd0] sm:$0xff]
  %v1299 = vld [vmem:[#allocation3 + $0xd8] sm:$0xff]
  %v1300 = vld [vmem:[#allocation3 + $0xe0] sm:$0xff]
  %v1301 = vld [vmem:[#allocation3 + $0xe8] sm:$0xff]
  %v1302 = vld [vmem:[#allocation3 + $0xf0] sm:$0xff]
  %v1303 = vld [vmem:[#allocation3 + $0xf8] sm:$0xff]
  %v1304 = vld [vmem:[#allocation3 + $0x100] sm:$0xff]
  %v1305 = vld [vmem:[#allocation3 + $0x108] sm:$0xff]
  %v1306 = vld [vmem:[#allocation3 + $0x110] sm:$0xff]
  %v1307 = vld [vmem:[#allocation3 + $0x118] sm:$0xff]
  %v1308 = vpack.c.bf16 %v1276, %v1272
  %v1309 = vpack.c.bf16 %v1277, %v1273
  %v1310 = vpack.c.bf16 %v1278, %v1274
  %v1311 = vpack.c.bf16 %v1279, %v1275
  %v1312 = vpack.c.bf16 %v1284, %v1280
  %v1313 = vpack.c.bf16 %v1285, %v1281
  %v1314 = vpack.c.bf16 %v1286, %v1282
  %v1315 = vpack.c.bf16 %v1287, %v1283
  %v1316 = vpack.c.bf16 %v1292, %v1288
  %v1317 = vpack.c.bf16 %v1293, %v1289
  %v1318 = vpack.c.bf16 %v1294, %v1290
  %v1319 = vpack.c.bf16 %v1295, %v1291
  %v1320 = vpack.c.bf16 %v1300, %v1296
  %v1321 = vpack.c.bf16 %v1301, %v1297
  %v1322 = vpack.c.bf16 %v1302, %v1298
  %v1323 = vpack.c.bf16 %v1303, %v1299
  %v1324 = vpack.c.bf16 %v1304, %v1304
  %v1325 = vpack.c.bf16 %v1305, %v1305
  %v1326 = vpack.c.bf16 %v1306, %v1306
  %v1327 = vpack.c.bf16 %v1307, %v1307
  %vm1328 = vcmask 588800
  %v1330 = vsel %vm1328, %v1271, 0
  %vm1332 = vcmask 1043456
  %v1334 = vsel %vm1332, %v1324, 0
  %v1337 = vsel %vm1332, %v1325, 0
  %v1340 = vsel %vm1332, %v1326, 0
  %v1343 = vsel %vm1332, %v1327, 0
  %1345 = vmatprep.subr.bf16.mxu0 0
  %1346 = vmatpush1.bf16.msra.mxu0 0
  %1347 = vmatprep.subr.bf16.mxu0 0
  %1348 = vmatpush1.bf16.msra.mxu0 0
  %1349 = vmatprep.subr.bf16.mxu0 0
  %1350 = vmatpush1.bf16.msra.mxu0 0
  %1351 = vmatprep.subr.bf16.mxu0 %v1337
  %1352 = vmatpush1.bf16.msra.mxu0 %v1334
  %1353 = vmatprep.subr.bf16.mxu0 %v1321
  %1354 = vmatpush1.bf16.msra.mxu0 %v1320
  %1355 = vmatprep.subr.bf16.mxu0 %v1317
  %1356 = vmatpush1.bf16.msra.mxu0 %v1316
  %1357 = vmatprep.subr.bf16.mxu0 %v1313
  %1358 = vmatpush1.bf16.msra.mxu0 %v1312
  %1359 = vmatprep.subr.bf16.mxu0 %v1309
  %1360 = vmatpush1.bf16.msra.mxu0 %v1308
  %1361 = vmatprep.subr.bf16.mxu0 0
  %1362 = vmatpush2.bf16.msra.mxu0 0
  %1363 = vmatprep.subr.bf16.mxu0 0
  %1364 = vmatpush2.bf16.msra.mxu0 0
  %1365 = vmatprep.subr.bf16.mxu0 0
  %1366 = vmatpush2.bf16.msra.mxu0 0
  %1367 = vmatprep.subr.bf16.mxu0 0
  %1368 = vmatpush2.bf16.msra.mxu0 0
  %1369 = vmatprep.subr.bf16.mxu0 0
  %1370 = vmatpush2.bf16.msra.mxu0 0
  %1371 = vmatprep.subr.bf16.mxu0 0
  %1372 = vmatpush2.bf16.msra.mxu0 0
  %1373 = vmatprep.subr.bf16.mxu0 0
  %1374 = vmatpush2.bf16.msra.mxu0 0
  %1375 = vmatprep.subr.bf16.mxu0 0
  %1376 = vmatpush2.bf16.msra.mxu0 0
  %1377 = vmatprep.mubr.bf16.mxu0 0
  %1378 = vmatmul.mubr.bf16.gmra.mxu0 %v1330
  %v1379 = vpop.f32.mrf.mxu0
  %v1380 = vadd.f32 0.0, %v1379
  %v1381 = vpop.f32.mrf.mxu0
  %v1382 = vadd.f32 0.0, %v1381
  %v1383 = vpop.f32.mrf.mxu0
  %v1384 = vpop.f32.mrf.mxu0
  %1385 = vdwg.mxu0
  %1386 = vmatprep.subr.bf16.mxu0 0
  %1387 = vmatpush1.bf16.msra.mxu0 0
  %1388 = vmatprep.subr.bf16.mxu0 0
  %1389 = vmatpush1.bf16.msra.mxu0 0
  %1390 = vmatprep.subr.bf16.mxu0 0
  %1391 = vmatpush1.bf16.msra.mxu0 0
  %1392 = vmatprep.subr.bf16.mxu0 %v1343
  %1393 = vmatpush1.bf16.msra.mxu0 %v1340
  %1394 = vmatprep.subr.bf16.mxu0 %v1323
  %1395 = vmatpush1.bf16.msra.mxu0 %v1322
  %1396 = vmatprep.subr.bf16.mxu0 %v1319
  %1397 = vmatpush1.bf16.msra.mxu0 %v1318
  %1398 = vmatprep.subr.bf16.mxu0 %v1315
  %1399 = vmatpush1.bf16.msra.mxu0 %v1314
  %1400 = vmatprep.subr.bf16.mxu0 %v1311
  %1401 = vmatpush1.bf16.msra.mxu0 %v1310
  %1402 = vmatprep.subr.bf16.mxu0 0
  %1403 = vmatpush2.bf16.msra.mxu0 0
  %1404 = vmatprep.subr.bf16.mxu0 0
  %1405 = vmatpush2.bf16.msra.mxu0 0
  %1406 = vmatprep.subr.bf16.mxu0 0
  %1407 = vmatpush2.bf16.msra.mxu0 0
  %1408 = vmatprep.subr.bf16.mxu0 0
  %1409 = vmatpush2.bf16.msra.mxu0 0
  %1410 = vmatprep.subr.bf16.mxu0 0
  %1411 = vmatpush2.bf16.msra.mxu0 0
  %1412 = vmatprep.subr.bf16.mxu0 0
  %1413 = vmatpush2.bf16.msra.mxu0 0
  %1414 = vmatprep.subr.bf16.mxu0 0
  %1415 = vmatpush2.bf16.msra.mxu0 0
  %1416 = vmatprep.subr.bf16.mxu0 0
  %1417 = vmatpush2.bf16.msra.mxu0 0
  %1418 = vmatprep.mubr.bf16.mxu0 0
  %1419 = vmatmul.mubr.bf16.gmra.mxu0 %v1330
  %v1420 = vpop.f32.mrf.mxu0
  %v1421 = vadd.f32 0.0, %v1420
  %v1422 = vpop.f32.mrf.mxu0
  %v1423 = vadd.f32 0.0, %v1422
  %v1424 = vpop.f32.mrf.mxu0
  %v1425 = vpop.f32.mrf.mxu0
  %1426 = vdwg.mxu0
  %v1427 = vadd.f32 %v998, %v1380
  %v1428 = vadd.f32 %v1000, %v1382
  %v1429 = vadd.f32 %v1049, %v1421
  %v1430 = vadd.f32 %v1051, %v1423
  %v1431 = vtanh.pop %v1427
  %v1432 = vtanh.pop %v1428
  %v1433 = vtanh.pop %v1429
  %v1434 = vtanh.pop %v1430
  %v1435 = vsub.f32 1.0, %v1072
  %v1436 = vsub.f32 1.0, %v1074
  %v1437 = vsub.f32 1.0, %v1076
  %v1438 = vsub.f32 1.0, %v1078
  %v1439 = vmul.f32 %v1435, %v40
  %v1440 = vmul.f32 %v1436, %v41
  %v1441 = vmul.f32 %v1437, %v43
  %v1442 = vmul.f32 %v1438, %v44
  %v1443 = vmul.f32 %v1072, %v1431
  %v1444 = vmul.f32 %v1074, %v1432
  %v1445 = vmul.f32 %v1076, %v1433
  %v1446 = vmul.f32 %v1078, %v1434
  %v1447 = vadd.f32 %v1439, %v1443
  %v1448 = vadd.f32 %v1440, %v1444
  %v1449 = vadd.f32 %v1441, %v1445
  %v1450 = vadd.f32 %v1442, %v1446
  %1451 = vst [vmem:[%s4] sm:$0xff] %v1447
  %1452 = vst [vmem:[%s4 + $0x8] sm:$0xff] %v1448
  %s1453 = scalar_lea.vmem %s4, 16
  %1454 = vst [vmem:[%s1453] sm:$0xff] %v1449
  %1455 = vst [vmem:[%s1453 + $0x8] sm:$0xff] %v1450
  // Predicated region
  $region18: #{convgru_cell.1} parent=0 // pred_check
    _
  $region19: #{convgru_cell.1} parent=0 // pred_check_branch
    %1457 = sbr.rel (0) target = $region21
  $region20: #{convgru_cell.1} parent=0 // pred_region
    _
  $region21: #{convgru_cell.1} parent=0 // pred_fallthru
    _
  // Predicated region
  $region22: #{convgru_cell.1} parent=0 // pred_check
    _
  $region23: #{convgru_cell.1} parent=0 // pred_check_branch
    %1459 = sbr.rel (0) target = $region25
  $region24: #{convgru_cell.1} parent=0 // pred_region
    _
  $region25: #{convgru_cell.1} parent=0 // pred_fallthru
    _

</llo_original>
